<compile_context>
chip_gen: v5e
topology: v5e:2x2
jax: 0.10.0
libtpu: 0.0.40
codegen_flags: <defaults>
</compile_context>

<pallas_src>
import jax
import jax.numpy as jnp
from jax.experimental import pallas as pl
from jax.experimental.pallas import tpu as pltpu


# --------------------------------------------------------------------------
# Kernel
# --------------------------------------------------------------------------
def _aitm_kernel(x_ref,
                 w1, b1,                      # fused first layers (click | conversion)
                 cw2, cb2, cw3, cb3,          # click tower, layers 2-3
                 vw2, vb2, vw3, vb3,          # conversion tower, layers 2-3
                 iw, ib,                      # info layer
                 wqkv,                        # fused Q|K|V projection (no bias)
                 hwc, hbc, hwv, hbv,          # prediction heads as (1,H) rows + (1,1) bias
                 out_ref):                    # (2, Bt): row 0 = click, row 1 = conversion
    f32 = jnp.float32
    bf16 = jnp.bfloat16
    H = iw.shape[0]

    def dense(h, w_ref, b_ref=None):
        # bf16 MXU operands, f32 accumulation; bias / activations stay f32.
        y = jnp.dot(h.astype(bf16), w_ref[...], preferred_element_type=f32)
        if b_ref is not None:
            y = y + b_ref[...]
        return y

    def relu(v):
        return jnp.maximum(v, 0.0)

    x = x_ref[...]                                        # (Bt, Din) f32

    # Fused first layer of both towers: one (Bt,Din)x(Din,2H) matmul.
    h1 = relu(dense(x, w1, b1))                           # (Bt, 2H)
    tc = h1[:, :H]
    tv = h1[:, H:]

    tc = relu(dense(relu(dense(tc, cw2, cb2)), cw3, cb3))     # click tower       (Bt, H)
    tv = relu(dense(relu(dense(tv, vw2, vb2)), vw3, vb3))     # conversion tower  (Bt, H)
    info = relu(dense(tc, iw, ib))                             # info layer        (Bt, H)

    # 1-head self-attention over the 2-token sequence [tv, info], fused QKV, unrolled.
    qkv0 = dense(tv, wqkv)                                 # (Bt, 3H)
    qkv1 = dense(info, wqkv)                               # (Bt, 3H)
    q0, k0, v0 = qkv0[:, :H], qkv0[:, H:2 * H], qkv0[:, 2 * H:]
    q1, k1, v1 = qkv1[:, :H], qkv1[:, H:2 * H], qkv1[:, 2 * H:]

    s00 = jnp.sum(q0 * k0, axis=-1, keepdims=True)         # (Bt, 1)
    s01 = jnp.sum(q0 * k1, axis=-1, keepdims=True)
    s10 = jnp.sum(q1 * k0, axis=-1, keepdims=True)
    s11 = jnp.sum(q1 * k1, axis=-1, keepdims=True)

    m0 = jnp.maximum(s00, s01)
    e00 = jnp.exp(s00 - m0)
    e01 = jnp.exp(s01 - m0)
    inv0 = pl.reciprocal(e00 + e01, approx=True)
    m1 = jnp.maximum(s10, s11)
    e10 = jnp.exp(s10 - m1)
    e11 = jnp.exp(s11 - m1)
    inv1 = pl.reciprocal(e10 + e11, approx=True)

    out0 = relu((e00 * inv0) * v0 + (e01 * inv0) * v1 + tv)
    out1 = relu((e10 * inv1) * v0 + (e11 * inv1) * v1 + info)
    ait = out0 + out1                                       # sum over seq axis  (Bt, H)

    # Prediction heads on the VPU (an N=1 matmul wastes the MXU).
    z1 = jnp.sum(tc * hwc[...], axis=-1, keepdims=True) + hbc[...]     # (Bt, 1)
    z2 = jnp.sum(ait * hwv[...], axis=-1, keepdims=True) + hbv[...]    # (Bt, 1)
    p1 = pl.reciprocal(1.0 + jnp.exp(-z1), approx=True)
    p2 = pl.reciprocal(1.0 + jnp.exp(-z2), approx=True)

    # Lane-dense output slab: (2, Bt) with the batch along lanes.
    out_ref[...] = jnp.concatenate([p1, p2], axis=1).T.astype(out_ref.dtype)


# --------------------------------------------------------------------------
# Tiling / VMEM planning
# --------------------------------------------------------------------------
def _vmem_capacity_bytes() -> int:
    try:
        return int(pltpu.get_tpu_info().vmem_capacity_bytes)
    except Exception:
        return 64 * 1024 * 1024          # conservative (v7x-sized) fallback


def _plan_tiles(B: int, d_in: int, d_hidden: int, weight_bytes: int):
    cap = _vmem_capacity_bytes()
    # Headroom for Mosaic internal scratch; never ask for more than 100 MiB.
    vmem_limit = int(min(max(cap - (16 << 20), 32 << 20), 100 << 20))

    # f32 per-row live intermediates (h1: 2H, tower stages, qkv: 2x3H, attn temps, ait, ...)
    per_row = 4 * (2 * d_in + 28 * d_hidden)
    budget = vmem_limit - 2 * weight_bytes - (4 << 20)     # weights may be double-buffered
    bt_max = budget // max(per_row, 1)
    bt_max = int(max(8, min(512, (bt_max // 8) * 8)))

    b8 = ((B + 7) // 8) * 8
    n_tiles = max(1, -(-b8 // bt_max))
    if b8 >= 16:
        n_tiles = max(n_tiles, 2)        # >=2 programs -> 2-TC sharding on v7x
    bt = -(-B // n_tiles)
    bt = ((bt + 7) // 8) * 8
    n_tiles = -(-b8 // bt)
    return bt, n_tiles, vmem_limit


# --------------------------------------------------------------------------
# Wrapper
# --------------------------------------------------------------------------
def aitm_forward(feat: jax.Array, params: dict) -> tuple[jax.Array, jax.Array]:
    """feat: (B, F*E) flattened feature embeddings; returns (click, conversion)."""
    feat = jnp.asarray(feat, jnp.float32)
    B, d_in = feat.shape
    H = params["cw3"].shape[1]
    bf16 = jnp.bfloat16

    # Weight prep: fuse first layers and QKV, cast matmul weights to bf16,
    # keep biases / head weights f32 (they live on the VPU).
    w1 = jnp.concatenate([params["cw1"], params["vw1"]], axis=1).astype(bf16)   # (Din, 2H)
    b1 = jnp.concatenate([params["cb1"], params["vb1"]], axis=1)                # (1, 2H)
    wqkv = jnp.concatenate([params["wq"], params["wk"], params["wv"]],
                           axis=1).astype(bf16)                                 # (H, 3H)
    weights = [
        w1, b1,
        params["cw2"].astype(bf16), params["cb2"],
        params["cw3"].astype(bf16), params["cb3"],
        params["vw2"].astype(bf16), params["vb2"],
        params["vw3"].astype(bf16), params["vb3"],
        params["iw"].astype(bf16), params["ib"],
        wqkv,
        params["hwc"].T, params["hbc"],          # (1, H), (1, 1)
        params["hwv"].T, params["hbv"],          # (1, H), (1, 1)
    ]
    weight_bytes = int(sum(int(a.size) * a.dtype.itemsize for a in weights))

    Bt, G, vmem_limit = _plan_tiles(B, d_in, H, weight_bytes)
    B_pad = Bt * G
    if B_pad != B:
        feat = jnp.pad(feat, ((0, B_pad - B), (0, 0)))

    def w_spec(a):
        return pl.BlockSpec(a.shape, lambda i: (0, 0))     # resident, grid-invariant

    in_specs = [pl.BlockSpec((Bt, d_in), lambda i: (i, 0))] + [w_spec(a) for a in weights]
    out_specs = pl.BlockSpec((None, 2, Bt), lambda i: (i, 0, 0))

    out = pl.pallas_call(
        _aitm_kernel,
        out_shape=jax.ShapeDtypeStruct((G, 2, Bt), jnp.float32),
        grid_spec=pltpu.PrefetchScalarGridSpec(
            num_scalar_prefetch=0,
            grid=(G,),
            in_specs=in_specs,
            out_specs=out_specs,
        ),
        compiler_params=pltpu.CompilerParams(
            dimension_semantics=("parallel",),
            vmem_limit_bytes=vmem_limit),
    )(feat, *weights)

    preds = jnp.transpose(out, (1, 0, 2)).reshape(2, B_pad)
    return preds[0, :B], preds[1, :B]


# --------------------------------------------------------------------------
# Pure-JAX f32 reference (mirrors the torch module literally)
# --------------------------------------------------------------------------
def aitm_reference(feat, p):
    def mlp(h, names):
        for wn, bn in names:
            h = jnp.maximum(h @ p[wn] + p[bn], 0.0)
        return h

    tc = mlp(feat, [("cw1", "cb1"), ("cw2", "cb2"), ("cw3", "cb3")])
    tv = mlp(feat, [("vw1", "vb1"), ("vw2", "vb2"), ("vw3", "vb3")])
    info = jnp.maximum(tc @ p["iw"] + p["ib"], 0.0)

    xseq = jnp.stack([tv, info], axis=1)                 # (B, 2, H)
    q = xseq @ p["wq"]; k = xseq @ p["wk"]; v = xseq @ p["wv"]
    att = jnp.einsum("bqd,bkd->bqk", q, k)
    att = jax.nn.softmax(att, axis=2)
    out = jnp.maximum(jnp.einsum("bqk,bkd->bqd", att, v) + xseq, 0.0)
    ait = out.sum(axis=1)

    click = jax.nn.sigmoid(tc @ p["hwc"] + p["hbc"])[:, 0]
    conv = jax.nn.sigmoid(ait @ p["hwv"] + p["hbv"])[:, 0]
    return click, conv


# --------------------------------------------------------------------------
# Parameter init (xavier-normal weights, zero biases; weights stored (in, out))
# --------------------------------------------------------------------------
def init_params(key, d_in, d_hidden):
    ks = iter(jax.random.split(key, 32))

    def xavier(shape):
        fan_in, fan_out = shape
        std = (2.0 / (fan_in + fan_out)) ** 0.5
        return std * jax.random.normal(next(ks), shape, dtype=jnp.float32)

    p = {}
    dims = [d_in, d_hidden, d_hidden, d_hidden]
    for prefix in ("c", "v"):                            # click / conversion towers
        for i in range(3):
            p[f"{prefix}w{i + 1}"] = xavier((dims[i], dims[i + 1]))
            p[f"{prefix}b{i + 1}"] = jnp.zeros((1, dims[i + 1]), jnp.float32)
    p["iw"] = xavier((d_hidden, d_hidden))
    p["ib"] = jnp.zeros((1, d_hidden), jnp.float32)
    p["wq"] = xavier((d_hidden, d_hidden))
    p["wk"] = xavier((d_hidden, d_hidden))
    p["wv"] = xavier((d_hidden, d_hidden))
    p["hwc"] = xavier((d_hidden, 1))
    p["hbc"] = jnp.zeros((1, 1), jnp.float32)
    p["hwv"] = xavier((d_hidden, 1))
    p["hbv"] = jnp.zeros((1, 1), jnp.float32)
    return p


# --------------------------------------------------------------------------
if __name__ == "__main__":
    key = jax.random.PRNGKey(0)
    B = 8
    embedding_dim = 32
    vocab_sizes = {"user_id": 100, "item_id": 200, "cate_id": 50, "shop_id": 80}
    feature_names = list(vocab_sizes.keys())
    d_in = len(feature_names) * embedding_dim            # 4 * 32 = 128
    d_hidden = 128                                       # small-test tower width

    k_tab, k_ids, k_par = jax.random.split(key, 3)

    tab_keys = jax.random.split(k_tab, len(feature_names))
    tables = {n: 0.1 * jax.random.normal(tk, (vocab_sizes[n] + 1, embedding_dim),
                                         dtype=jnp.float32)
              for n, tk in zip(feature_names, tab_keys)}
    id_keys = jax.random.split(k_ids, len(feature_names))
    data = {n: jax.random.randint(ik, (B,), 0, vocab_sizes[n] + 1)
            for n, ik in zip(feature_names, id_keys)}

    # Embedding lookups (data-dependent gather) done in JAX; matches
    # EmbeddingLayer: stack per-feature embeddings then flatten(start_dim=1).
    # TODO(synk): the nn.Embedding gather itself stays outside the Pallas kernel.
    feat = jnp.concatenate([tables[n][data[n]] for n in feature_names], axis=-1)

    params = init_params(k_par, d_in, d_hidden)

    click, conv = aitm_forward(feat, params)
    click = jax.block_until_ready(click)
    conv = jax.block_until_ready(conv)

    ref_click, ref_conv = aitm_reference(feat, params)
    assert click.shape == (B,) and conv.shape == (B,)
    # bf16 MXU operands vs. f32 reference -> loosened tolerance on the probabilities.
    assert jnp.allclose(click, ref_click, atol=2e-2, rtol=2e-2), "task1_pred mismatch"
    assert jnp.allclose(conv, ref_conv, atol=2e-2, rtol=2e-2), "task2_pred mismatch"

    print("KERNEL_OK")
</pallas_src>

<mosaic_0001>
module attributes {stable_mosaic.version = 11 : i64} {
  func.func @_aitm_kernel(%arg0: i32, %arg1: memref<8x128xf32, #tpu.memory_space<vmem>>, %arg2: memref<128x256xbf16, #tpu.memory_space<vmem>>, %arg3: memref<1x256xf32, #tpu.memory_space<vmem>>, %arg4: memref<128x128xbf16, #tpu.memory_space<vmem>>, %arg5: memref<1x128xf32, #tpu.memory_space<vmem>>, %arg6: memref<128x128xbf16, #tpu.memory_space<vmem>>, %arg7: memref<1x128xf32, #tpu.memory_space<vmem>>, %arg8: memref<128x128xbf16, #tpu.memory_space<vmem>>, %arg9: memref<1x128xf32, #tpu.memory_space<vmem>>, %arg10: memref<128x128xbf16, #tpu.memory_space<vmem>>, %arg11: memref<1x128xf32, #tpu.memory_space<vmem>>, %arg12: memref<128x128xbf16, #tpu.memory_space<vmem>>, %arg13: memref<1x128xf32, #tpu.memory_space<vmem>>, %arg14: memref<128x384xbf16, #tpu.memory_space<vmem>>, %arg15: memref<1x128xf32, #tpu.memory_space<vmem>>, %arg16: memref<1x1xf32, #tpu.memory_space<vmem>>, %arg17: memref<1x128xf32, #tpu.memory_space<vmem>>, %arg18: memref<1x1xf32, #tpu.memory_space<vmem>>, %arg19: memref<1x2x8xf32, #tpu.memory_space<vmem>>) attributes {dimension_semantics = [#tpu.dimension_semantics<parallel>], iteration_bounds = array<i64: 1>, scalar_prefetch = 0 : i64, scratch_operands = 0 : i64, tpu.core_type = #tpu.core_type<tc>, window_params = [{transform_indices = @transform_0, window_bounds = array<i64: 8, 128>}, {pipeline_mode = #tpu.pipeline_mode<synchronous>, transform_indices = @transform_1, window_bounds = array<i64: 128, 256>}, {pipeline_mode = #tpu.pipeline_mode<synchronous>, transform_indices = @transform_2, window_bounds = array<i64: 1, 256>}, {pipeline_mode = #tpu.pipeline_mode<synchronous>, transform_indices = @transform_3, window_bounds = array<i64: 128, 128>}, {pipeline_mode = #tpu.pipeline_mode<synchronous>, transform_indices = @transform_4, window_bounds = array<i64: 1, 128>}, {pipeline_mode = #tpu.pipeline_mode<synchronous>, transform_indices = @transform_5, window_bounds = array<i64: 128, 128>}, {pipeline_mode = #tpu.pipeline_mode<synchronous>, transform_indices = @transform_6, window_bounds = array<i64: 1, 128>}, {pipeline_mode = #tpu.pipeline_mode<synchronous>, transform_indices = @transform_7, window_bounds = array<i64: 128, 128>}, {pipeline_mode = #tpu.pipeline_mode<synchronous>, transform_indices = @transform_8, window_bounds = array<i64: 1, 128>}, {pipeline_mode = #tpu.pipeline_mode<synchronous>, transform_indices = @transform_9, window_bounds = array<i64: 128, 128>}, {pipeline_mode = #tpu.pipeline_mode<synchronous>, transform_indices = @transform_10, window_bounds = array<i64: 1, 128>}, {pipeline_mode = #tpu.pipeline_mode<synchronous>, transform_indices = @transform_11, window_bounds = array<i64: 128, 128>}, {pipeline_mode = #tpu.pipeline_mode<synchronous>, transform_indices = @transform_12, window_bounds = array<i64: 1, 128>}, {pipeline_mode = #tpu.pipeline_mode<synchronous>, transform_indices = @transform_13, window_bounds = array<i64: 128, 384>}, {pipeline_mode = #tpu.pipeline_mode<synchronous>, transform_indices = @transform_14, window_bounds = array<i64: 1, 128>}, {pipeline_mode = #tpu.pipeline_mode<synchronous>, transform_indices = @transform_15, window_bounds = array<i64: 1, 1>}, {pipeline_mode = #tpu.pipeline_mode<synchronous>, transform_indices = @transform_16, window_bounds = array<i64: 1, 128>}, {pipeline_mode = #tpu.pipeline_mode<synchronous>, transform_indices = @transform_17, window_bounds = array<i64: 1, 1>}, {transform_indices = @transform_18, window_bounds = array<i64: 1, 2, 8>}]} {
    %c0 = arith.constant 0 : index
    %c0_0 = arith.constant 0 : index
    %0 = vector.load %arg1[%c0, %c0_0] : memref<8x128xf32, #tpu.memory_space<vmem>>, vector<8x128xf32>
    %1 = arith.truncf %0 : vector<8x128xf32> to vector<8x128xbf16>
    %c0_1 = arith.constant 0 : index
    %c0_2 = arith.constant 0 : index
    %2 = vector.load %arg2[%c0_1, %c0_2] : memref<128x256xbf16, #tpu.memory_space<vmem>>, vector<128x256xbf16>
    %cst = arith.constant dense<0.000000e+00> : vector<8x256xf32>
    %3 = tpu.matmul %1, %2, %cst {dimension_numbers = #tpu.dot_dimension_numbers<[1], [0], [0], [1], [0, 0, 1, 1], [], []>} : vector<8x128xbf16>, vector<128x256xbf16>, vector<8x256xf32> -> vector<8x256xf32>
    %c0_3 = arith.constant 0 : index
    %c0_4 = arith.constant 0 : index
    %4 = vector.load %arg3[%c0_3, %c0_4] : memref<1x256xf32, #tpu.memory_space<vmem>>, vector<1x256xf32>
    %5 = vector.broadcast %4 : vector<1x256xf32> to vector<8x256xf32>
    %6 = arith.addf %3, %5 : vector<8x256xf32>
    %cst_5 = arith.constant 0.000000e+00 : f32
    %7 = vector.broadcast %cst_5 : f32 to vector<8x256xf32>
    %8 = arith.maximumf %6, %7 : vector<8x256xf32>
    %9 = vector.extract_strided_slice %8 {offsets = [0, 0], sizes = [8, 128], strides = [1, 1]} : vector<8x256xf32> to vector<8x128xf32>
    %10 = vector.extract_strided_slice %8 {offsets = [0, 128], sizes = [8, 128], strides = [1, 1]} : vector<8x256xf32> to vector<8x128xf32>
    %11 = arith.truncf %9 : vector<8x128xf32> to vector<8x128xbf16>
    %c0_6 = arith.constant 0 : index
    %c0_7 = arith.constant 0 : index
    %12 = vector.load %arg4[%c0_6, %c0_7] : memref<128x128xbf16, #tpu.memory_space<vmem>>, vector<128x128xbf16>
    %cst_8 = arith.constant dense<0.000000e+00> : vector<8x128xf32>
    %13 = tpu.matmul %11, %12, %cst_8 {dimension_numbers = #tpu.dot_dimension_numbers<[1], [0], [0], [1], [0, 0, 1, 1], [], []>} : vector<8x128xbf16>, vector<128x128xbf16>, vector<8x128xf32> -> vector<8x128xf32>
    %c0_9 = arith.constant 0 : index
    %c0_10 = arith.constant 0 : index
    %14 = vector.load %arg5[%c0_9, %c0_10] : memref<1x128xf32, #tpu.memory_space<vmem>>, vector<1x128xf32>
    %15 = vector.broadcast %14 : vector<1x128xf32> to vector<8x128xf32>
    %16 = arith.addf %13, %15 : vector<8x128xf32>
    %cst_11 = arith.constant 0.000000e+00 : f32
    %17 = vector.broadcast %cst_11 : f32 to vector<8x128xf32>
    %18 = arith.maximumf %16, %17 : vector<8x128xf32>
    %19 = arith.truncf %18 : vector<8x128xf32> to vector<8x128xbf16>
    %c0_12 = arith.constant 0 : index
    %c0_13 = arith.constant 0 : index
    %20 = vector.load %arg6[%c0_12, %c0_13] : memref<128x128xbf16, #tpu.memory_space<vmem>>, vector<128x128xbf16>
    %cst_14 = arith.constant dense<0.000000e+00> : vector<8x128xf32>
    %21 = tpu.matmul %19, %20, %cst_14 {dimension_numbers = #tpu.dot_dimension_numbers<[1], [0], [0], [1], [0, 0, 1, 1], [], []>} : vector<8x128xbf16>, vector<128x128xbf16>, vector<8x128xf32> -> vector<8x128xf32>
    %c0_15 = arith.constant 0 : index
    %c0_16 = arith.constant 0 : index
    %22 = vector.load %arg7[%c0_15, %c0_16] : memref<1x128xf32, #tpu.memory_space<vmem>>, vector<1x128xf32>
    %23 = vector.broadcast %22 : vector<1x128xf32> to vector<8x128xf32>
    %24 = arith.addf %21, %23 : vector<8x128xf32>
    %cst_17 = arith.constant 0.000000e+00 : f32
    %25 = vector.broadcast %cst_17 : f32 to vector<8x128xf32>
    %26 = arith.maximumf %24, %25 : vector<8x128xf32>
    %27 = arith.truncf %10 : vector<8x128xf32> to vector<8x128xbf16>
    %c0_18 = arith.constant 0 : index
    %c0_19 = arith.constant 0 : index
    %28 = vector.load %arg8[%c0_18, %c0_19] : memref<128x128xbf16, #tpu.memory_space<vmem>>, vector<128x128xbf16>
    %cst_20 = arith.constant dense<0.000000e+00> : vector<8x128xf32>
    %29 = tpu.matmul %27, %28, %cst_20 {dimension_numbers = #tpu.dot_dimension_numbers<[1], [0], [0], [1], [0, 0, 1, 1], [], []>} : vector<8x128xbf16>, vector<128x128xbf16>, vector<8x128xf32> -> vector<8x128xf32>
    %c0_21 = arith.constant 0 : index
    %c0_22 = arith.constant 0 : index
    %30 = vector.load %arg9[%c0_21, %c0_22] : memref<1x128xf32, #tpu.memory_space<vmem>>, vector<1x128xf32>
    %31 = vector.broadcast %30 : vector<1x128xf32> to vector<8x128xf32>
    %32 = arith.addf %29, %31 : vector<8x128xf32>
    %cst_23 = arith.constant 0.000000e+00 : f32
    %33 = vector.broadcast %cst_23 : f32 to vector<8x128xf32>
    %34 = arith.maximumf %32, %33 : vector<8x128xf32>
    %35 = arith.truncf %34 : vector<8x128xf32> to vector<8x128xbf16>
    %c0_24 = arith.constant 0 : index
    %c0_25 = arith.constant 0 : index
    %36 = vector.load %arg10[%c0_24, %c0_25] : memref<128x128xbf16, #tpu.memory_space<vmem>>, vector<128x128xbf16>
    %cst_26 = arith.constant dense<0.000000e+00> : vector<8x128xf32>
    %37 = tpu.matmul %35, %36, %cst_26 {dimension_numbers = #tpu.dot_dimension_numbers<[1], [0], [0], [1], [0, 0, 1, 1], [], []>} : vector<8x128xbf16>, vector<128x128xbf16>, vector<8x128xf32> -> vector<8x128xf32>
    %c0_27 = arith.constant 0 : index
    %c0_28 = arith.constant 0 : index
    %38 = vector.load %arg11[%c0_27, %c0_28] : memref<1x128xf32, #tpu.memory_space<vmem>>, vector<1x128xf32>
    %39 = vector.broadcast %38 : vector<1x128xf32> to vector<8x128xf32>
    %40 = arith.addf %37, %39 : vector<8x128xf32>
    %cst_29 = arith.constant 0.000000e+00 : f32
    %41 = vector.broadcast %cst_29 : f32 to vector<8x128xf32>
    %42 = arith.maximumf %40, %41 : vector<8x128xf32>
    %43 = arith.truncf %26 : vector<8x128xf32> to vector<8x128xbf16>
    %c0_30 = arith.constant 0 : index
    %c0_31 = arith.constant 0 : index
    %44 = vector.load %arg12[%c0_30, %c0_31] : memref<128x128xbf16, #tpu.memory_space<vmem>>, vector<128x128xbf16>
    %cst_32 = arith.constant dense<0.000000e+00> : vector<8x128xf32>
    %45 = tpu.matmul %43, %44, %cst_32 {dimension_numbers = #tpu.dot_dimension_numbers<[1], [0], [0], [1], [0, 0, 1, 1], [], []>} : vector<8x128xbf16>, vector<128x128xbf16>, vector<8x128xf32> -> vector<8x128xf32>
    %c0_33 = arith.constant 0 : index
    %c0_34 = arith.constant 0 : index
    %46 = vector.load %arg13[%c0_33, %c0_34] : memref<1x128xf32, #tpu.memory_space<vmem>>, vector<1x128xf32>
    %47 = vector.broadcast %46 : vector<1x128xf32> to vector<8x128xf32>
    %48 = arith.addf %45, %47 : vector<8x128xf32>
    %cst_35 = arith.constant 0.000000e+00 : f32
    %49 = vector.broadcast %cst_35 : f32 to vector<8x128xf32>
    %50 = arith.maximumf %48, %49 : vector<8x128xf32>
    %51 = arith.truncf %42 : vector<8x128xf32> to vector<8x128xbf16>
    %c0_36 = arith.constant 0 : index
    %c0_37 = arith.constant 0 : index
    %52 = vector.load %arg14[%c0_36, %c0_37] : memref<128x384xbf16, #tpu.memory_space<vmem>>, vector<128x384xbf16>
    %cst_38 = arith.constant dense<0.000000e+00> : vector<8x384xf32>
    %53 = tpu.matmul %51, %52, %cst_38 {dimension_numbers = #tpu.dot_dimension_numbers<[1], [0], [0], [1], [0, 0, 1, 1], [], []>} : vector<8x128xbf16>, vector<128x384xbf16>, vector<8x384xf32> -> vector<8x384xf32>
    %54 = arith.truncf %50 : vector<8x128xf32> to vector<8x128xbf16>
    %c0_39 = arith.constant 0 : index
    %c0_40 = arith.constant 0 : index
    %55 = vector.load %arg14[%c0_39, %c0_40] : memref<128x384xbf16, #tpu.memory_space<vmem>>, vector<128x384xbf16>
    %cst_41 = arith.constant dense<0.000000e+00> : vector<8x384xf32>
    %56 = tpu.matmul %54, %55, %cst_41 {dimension_numbers = #tpu.dot_dimension_numbers<[1], [0], [0], [1], [0, 0, 1, 1], [], []>} : vector<8x128xbf16>, vector<128x384xbf16>, vector<8x384xf32> -> vector<8x384xf32>
    %57 = vector.extract_strided_slice %53 {offsets = [0, 0], sizes = [8, 128], strides = [1, 1]} : vector<8x384xf32> to vector<8x128xf32>
    %58 = vector.extract_strided_slice %53 {offsets = [0, 128], sizes = [8, 128], strides = [1, 1]} : vector<8x384xf32> to vector<8x128xf32>
    %59 = vector.extract_strided_slice %53 {offsets = [0, 256], sizes = [8, 128], strides = [1, 1]} : vector<8x384xf32> to vector<8x128xf32>
    %60 = vector.extract_strided_slice %56 {offsets = [0, 0], sizes = [8, 128], strides = [1, 1]} : vector<8x384xf32> to vector<8x128xf32>
    %61 = vector.extract_strided_slice %56 {offsets = [0, 128], sizes = [8, 128], strides = [1, 1]} : vector<8x384xf32> to vector<8x128xf32>
    %62 = vector.extract_strided_slice %56 {offsets = [0, 256], sizes = [8, 128], strides = [1, 1]} : vector<8x384xf32> to vector<8x128xf32>
    %63 = arith.mulf %57, %58 : vector<8x128xf32>
    %cst_42 = arith.constant dense<0.000000e+00> : vector<8xf32>
    %64 = vector.multi_reduction <add>, %63, %cst_42 [1] : vector<8x128xf32> to vector<8xf32>
    %65 = vector.shape_cast %64 : vector<8xf32> to vector<8x1xf32>
    %66 = arith.mulf %57, %61 : vector<8x128xf32>
    %cst_43 = arith.constant dense<0.000000e+00> : vector<8xf32>
    %67 = vector.multi_reduction <add>, %66, %cst_43 [1] : vector<8x128xf32> to vector<8xf32>
    %68 = vector.shape_cast %67 : vector<8xf32> to vector<8x1xf32>
    %69 = arith.mulf %60, %58 : vector<8x128xf32>
    %cst_44 = arith.constant dense<0.000000e+00> : vector<8xf32>
    %70 = vector.multi_reduction <add>, %69, %cst_44 [1] : vector<8x128xf32> to vector<8xf32>
    %71 = vector.shape_cast %70 : vector<8xf32> to vector<8x1xf32>
    %72 = arith.mulf %60, %61 : vector<8x128xf32>
    %cst_45 = arith.constant dense<0.000000e+00> : vector<8xf32>
    %73 = vector.multi_reduction <add>, %72, %cst_45 [1] : vector<8x128xf32> to vector<8xf32>
    %74 = vector.shape_cast %73 : vector<8xf32> to vector<8x1xf32>
    %75 = arith.maximumf %65, %68 : vector<8x1xf32>
    %76 = arith.subf %65, %75 : vector<8x1xf32>
    %77 = math.exp %76 : vector<8x1xf32>
    %78 = arith.subf %68, %75 : vector<8x1xf32>
    %79 = math.exp %78 : vector<8x1xf32>
    %80 = arith.addf %77, %79 : vector<8x1xf32>
    %81 = tpu.reciprocal %80 {approx = true} : vector<8x1xf32> -> vector<8x1xf32>
    %82 = arith.maximumf %71, %74 : vector<8x1xf32>
    %83 = arith.subf %71, %82 : vector<8x1xf32>
    %84 = math.exp %83 : vector<8x1xf32>
    %85 = arith.subf %74, %82 : vector<8x1xf32>
    %86 = math.exp %85 : vector<8x1xf32>
    %87 = arith.addf %84, %86 : vector<8x1xf32>
    %88 = tpu.reciprocal %87 {approx = true} : vector<8x1xf32> -> vector<8x1xf32>
    %89 = arith.mulf %77, %81 : vector<8x1xf32>
    %90 = vector.broadcast %89 : vector<8x1xf32> to vector<8x128xf32>
    %91 = arith.mulf %90, %59 : vector<8x128xf32>
    %92 = arith.mulf %79, %81 : vector<8x1xf32>
    %93 = vector.broadcast %92 : vector<8x1xf32> to vector<8x128xf32>
    %94 = arith.mulf %93, %62 : vector<8x128xf32>
    %95 = arith.addf %91, %94 : vector<8x128xf32>
    %96 = arith.addf %95, %42 : vector<8x128xf32>
    %cst_46 = arith.constant 0.000000e+00 : f32
    %97 = vector.broadcast %cst_46 : f32 to vector<8x128xf32>
    %98 = arith.maximumf %96, %97 : vector<8x128xf32>
    %99 = arith.mulf %84, %88 : vector<8x1xf32>
    %100 = vector.broadcast %99 : vector<8x1xf32> to vector<8x128xf32>
    %101 = arith.mulf %100, %59 : vector<8x128xf32>
    %102 = arith.mulf %86, %88 : vector<8x1xf32>
    %103 = vector.broadcast %102 : vector<8x1xf32> to vector<8x128xf32>
    %104 = arith.mulf %103, %62 : vector<8x128xf32>
    %105 = arith.addf %101, %104 : vector<8x128xf32>
    %106 = arith.addf %105, %50 : vector<8x128xf32>
    %cst_47 = arith.constant 0.000000e+00 : f32
    %107 = vector.broadcast %cst_47 : f32 to vector<8x128xf32>
    %108 = arith.maximumf %106, %107 : vector<8x128xf32>
    %109 = arith.addf %98, %108 : vector<8x128xf32>
    %c0_48 = arith.constant 0 : index
    %c0_49 = arith.constant 0 : index
    %110 = vector.load %arg15[%c0_48, %c0_49] : memref<1x128xf32, #tpu.memory_space<vmem>>, vector<1x128xf32>
    %111 = vector.broadcast %110 : vector<1x128xf32> to vector<8x128xf32>
    %112 = arith.mulf %26, %111 : vector<8x128xf32>
    %cst_50 = arith.constant dense<0.000000e+00> : vector<8xf32>
    %113 = vector.multi_reduction <add>, %112, %cst_50 [1] : vector<8x128xf32> to vector<8xf32>
    %114 = vector.shape_cast %113 : vector<8xf32> to vector<8x1xf32>
    %c0_51 = arith.constant 0 : index
    %c0_52 = arith.constant 0 : index
    %115 = vector.load %arg16[%c0_51, %c0_52] : memref<1x1xf32, #tpu.memory_space<vmem>>, vector<1x1xf32>
    %116 = vector.broadcast %115 : vector<1x1xf32> to vector<8x1xf32>
    %117 = arith.addf %114, %116 : vector<8x1xf32>
    %c0_53 = arith.constant 0 : index
    %c0_54 = arith.constant 0 : index
    %118 = vector.load %arg17[%c0_53, %c0_54] : memref<1x128xf32, #tpu.memory_space<vmem>>, vector<1x128xf32>
    %119 = vector.broadcast %118 : vector<1x128xf32> to vector<8x128xf32>
    %120 = arith.mulf %109, %119 : vector<8x128xf32>
    %cst_55 = arith.constant dense<0.000000e+00> : vector<8xf32>
    %121 = vector.multi_reduction <add>, %120, %cst_55 [1] : vector<8x128xf32> to vector<8xf32>
    %122 = vector.shape_cast %121 : vector<8xf32> to vector<8x1xf32>
    %c0_56 = arith.constant 0 : index
    %c0_57 = arith.constant 0 : index
    %123 = vector.load %arg18[%c0_56, %c0_57] : memref<1x1xf32, #tpu.memory_space<vmem>>, vector<1x1xf32>
    %124 = vector.broadcast %123 : vector<1x1xf32> to vector<8x1xf32>
    %125 = arith.addf %122, %124 : vector<8x1xf32>
    %cst_58 = arith.constant 0.000000e+00 : f32
    %126 = vector.broadcast %cst_58 : f32 to vector<8x1xf32>
    %127 = arith.subf %126, %117 : vector<8x1xf32>
    %128 = math.exp %127 : vector<8x1xf32>
    %cst_59 = arith.constant 1.000000e+00 : f32
    %129 = vector.broadcast %cst_59 : f32 to vector<8x1xf32>
    %130 = arith.addf %129, %128 : vector<8x1xf32>
    %131 = tpu.reciprocal %130 {approx = true} : vector<8x1xf32> -> vector<8x1xf32>
    %cst_60 = arith.constant 0.000000e+00 : f32
    %132 = vector.broadcast %cst_60 : f32 to vector<8x1xf32>
    %133 = arith.subf %132, %125 : vector<8x1xf32>
    %134 = math.exp %133 : vector<8x1xf32>
    %cst_61 = arith.constant 1.000000e+00 : f32
    %135 = vector.broadcast %cst_61 : f32 to vector<8x1xf32>
    %136 = arith.addf %135, %134 : vector<8x1xf32>
    %137 = tpu.reciprocal %136 {approx = true} : vector<8x1xf32> -> vector<8x1xf32>
    %138 = tpu.concatenate %131, %137 in 1 : vector<8x1xf32>, vector<8x1xf32> -> vector<8x2xf32>
    %139 = tpu.transpose %138, [1, 0] : vector<8x2xf32> -> vector<2x8xf32>
    %c0_62 = arith.constant 0 : index
    %c0_63 = arith.constant 0 : index
    %c0_64 = arith.constant 0 : index
    %140 = vector.load %arg19[%c0_62, %c0_63, %c0_64] : memref<1x2x8xf32, #tpu.memory_space<vmem>>, vector<1x2x8xf32>
    %141 = vector.shape_cast %140 : vector<1x2x8xf32> to vector<2x8xf32>
    %142 = vector.shape_cast %139 : vector<2x8xf32> to vector<1x2x8xf32>
    tpu.vector_store %arg19[%c0_62, %c0_63, %c0_64], %142 {strides = array<i32>} : memref<1x2x8xf32, #tpu.memory_space<vmem>>, vector<1x2x8xf32>,
    return
  }
  func.func @transform_0(%arg0: i32) -> (i32, i32) {
    %c0_i32 = arith.constant 0 : i32
    %c0_i32_0 = arith.constant 0 : i32
    return %arg0, %c0_i32 : i32, i32
  }
  func.func @transform_1(%arg0: i32) -> (i32, i32) {
    %c0_i32 = arith.constant 0 : i32
    %c0_i32_0 = arith.constant 0 : i32
    %c0_i32_1 = arith.constant 0 : i32
    return %c0_i32, %c0_i32_0 : i32, i32
  }
  func.func @transform_2(%arg0: i32) -> (i32, i32) {
    %c0_i32 = arith.constant 0 : i32
    %c0_i32_0 = arith.constant 0 : i32
    %c0_i32_1 = arith.constant 0 : i32
    return %c0_i32, %c0_i32_0 : i32, i32
  }
  func.func @transform_3(%arg0: i32) -> (i32, i32) {
    %c0_i32 = arith.constant 0 : i32
    %c0_i32_0 = arith.constant 0 : i32
    %c0_i32_1 = arith.constant 0 : i32
    return %c0_i32, %c0_i32_0 : i32, i32
  }
  func.func @transform_4(%arg0: i32) -> (i32, i32) {
    %c0_i32 = arith.constant 0 : i32
    %c0_i32_0 = arith.constant 0 : i32
    %c0_i32_1 = arith.constant 0 : i32
    return %c0_i32, %c0_i32_0 : i32, i32
  }
  func.func @transform_5(%arg0: i32) -> (i32, i32) {
    %c0_i32 = arith.constant 0 : i32
    %c0_i32_0 = arith.constant 0 : i32
    %c0_i32_1 = arith.constant 0 : i32
    return %c0_i32, %c0_i32_0 : i32, i32
  }
  func.func @transform_6(%arg0: i32) -> (i32, i32) {
    %c0_i32 = arith.constant 0 : i32
    %c0_i32_0 = arith.constant 0 : i32
    %c0_i32_1 = arith.constant 0 : i32
    return %c0_i32, %c0_i32_0 : i32, i32
  }
  func.func @transform_7(%arg0: i32) -> (i32, i32) {
    %c0_i32 = arith.constant 0 : i32
    %c0_i32_0 = arith.constant 0 : i32
    %c0_i32_1 = arith.constant 0 : i32
    return %c0_i32, %c0_i32_0 : i32, i32
  }
  func.func @transform_8(%arg0: i32) -> (i32, i32) {
    %c0_i32 = arith.constant 0 : i32
    %c0_i32_0 = arith.constant 0 : i32
    %c0_i32_1 = arith.constant 0 : i32
    return %c0_i32, %c0_i32_0 : i32, i32
  }
  func.func @transform_9(%arg0: i32) -> (i32, i32) {
    %c0_i32 = arith.constant 0 : i32
    %c0_i32_0 = arith.constant 0 : i32
    %c0_i32_1 = arith.constant 0 : i32
    return %c0_i32, %c0_i32_0 : i32, i32
  }
  func.func @transform_10(%arg0: i32) -> (i32, i32) {
    %c0_i32 = arith.constant 0 : i32
    %c0_i32_0 = arith.constant 0 : i32
    %c0_i32_1 = arith.constant 0 : i32
    return %c0_i32, %c0_i32_0 : i32, i32
  }
  func.func @transform_11(%arg0: i32) -> (i32, i32) {
    %c0_i32 = arith.constant 0 : i32
    %c0_i32_0 = arith.constant 0 : i32
    %c0_i32_1 = arith.constant 0 : i32
    return %c0_i32, %c0_i32_0 : i32, i32
  }
  func.func @transform_12(%arg0: i32) -> (i32, i32) {
    %c0_i32 = arith.constant 0 : i32
    %c0_i32_0 = arith.constant 0 : i32
    %c0_i32_1 = arith.constant 0 : i32
    return %c0_i32, %c0_i32_0 : i32, i32
  }
  func.func @transform_13(%arg0: i32) -> (i32, i32) {
    %c0_i32 = arith.constant 0 : i32
    %c0_i32_0 = arith.constant 0 : i32
    %c0_i32_1 = arith.constant 0 : i32
    return %c0_i32, %c0_i32_0 : i32, i32
  }
  func.func @transform_14(%arg0: i32) -> (i32, i32) {
    %c0_i32 = arith.constant 0 : i32
    %c0_i32_0 = arith.constant 0 : i32
    %c0_i32_1 = arith.constant 0 : i32
    return %c0_i32, %c0_i32_0 : i32, i32
  }
  func.func @transform_15(%arg0: i32) -> (i32, i32) {
    %c0_i32 = arith.constant 0 : i32
    %c0_i32_0 = arith.constant 0 : i32
    %c0_i32_1 = arith.constant 0 : i32
    return %c0_i32, %c0_i32_0 : i32, i32
  }
  func.func @transform_16(%arg0: i32) -> (i32, i32) {
    %c0_i32 = arith.constant 0 : i32
    %c0_i32_0 = arith.constant 0 : i32
    %c0_i32_1 = arith.constant 0 : i32
    return %c0_i32, %c0_i32_0 : i32, i32
  }
  func.func @transform_17(%arg0: i32) -> (i32, i32) {
    %c0_i32 = arith.constant 0 : i32
    %c0_i32_0 = arith.constant 0 : i32
    %c0_i32_1 = arith.constant 0 : i32
    return %c0_i32, %c0_i32_0 : i32, i32
  }
  func.func @transform_18(%arg0: i32) -> (i32, i32, i32) {
    %c0_i32 = arith.constant 0 : i32
    %c0_i32_0 = arith.constant 0 : i32
    %c0_i32_1 = arith.constant 0 : i32
    return %arg0, %c0_i32, %c0_i32_0 : i32, i32, i32
  }
}

</mosaic_0001>

<llo_original>
// kernel: tpu_custom_call.1
$region0: #{tpu_custom_call.1}
  #allocation0 [shape = 'u32[]', space=smem, size = 0x4, offset = 0x4, fixed_abs, tag = 'smem constant byte address 0x4 - core index']
  #allocation1 [shape = 'u32[72,128]{1,0:T(1,128)}', space=vmem, size = 0x9000, scoped, tag = 'internal scratch']
  #allocation2 [shape = 'f32[1,1]{1,0:T(1,128)S(1)}', space=vmem, size = 0x200, scoped, tag = 'scoped memory for tpu_custom_call.1']
  #allocation3 [shape = 'f32[1,1]{1,0:T(1,128)S(1)}', space=vmem, size = 0x200, scoped, tag = 'scoped memory for tpu_custom_call.1']
  %s0 = inlined_call_operand.hbm [shape: f32[8,128], index: 0, kind: input, shape index: {}]
  %s1 = inlined_call_operand.hbm [shape: bf16[128,256], index: 1, kind: input, shape index: {}]
  %s2 = inlined_call_operand.vmem [shape: f32[1,256], index: 2, kind: input, shape index: {}]
  %s3 = inlined_call_operand.hbm [shape: bf16[128,128], index: 3, kind: input, shape index: {}]
  %s4 = inlined_call_operand.vmem [shape: f32[1,128], index: 4, kind: input, shape index: {}]
  %s5 = inlined_call_operand.hbm [shape: bf16[128,128], index: 5, kind: input, shape index: {}]
  %s6 = inlined_call_operand.vmem [shape: f32[1,128], index: 6, kind: input, shape index: {}]
  %s7 = inlined_call_operand.hbm [shape: bf16[128,128], index: 7, kind: input, shape index: {}]
  %s8 = inlined_call_operand.vmem [shape: f32[1,128], index: 8, kind: input, shape index: {}]
  %s9 = inlined_call_operand.hbm [shape: bf16[128,128], index: 9, kind: input, shape index: {}]
  %s10 = inlined_call_operand.vmem [shape: f32[1,128], index: 10, kind: input, shape index: {}]
  %s11 = inlined_call_operand.hbm [shape: bf16[128,128], index: 11, kind: input, shape index: {}]
  %s12 = inlined_call_operand.vmem [shape: f32[1,128], index: 12, kind: input, shape index: {}]
  %s13 = inlined_call_operand.hbm [shape: bf16[128,384], index: 13, kind: input, shape index: {}]
  %s14 = inlined_call_operand.vmem [shape: f32[1,128], index: 14, kind: input, shape index: {}]
  %s15 = inlined_call_operand.<no memory space> [shape: f32[1,1], index: 15, kind: input, shape index: {}]
  %s16 = inlined_call_operand.vmem [shape: f32[1,128], index: 16, kind: input, shape index: {}]
  %s17 = inlined_call_operand.<no memory space> [shape: f32[1,1], index: 17, kind: input, shape index: {}]
  %s18 = inlined_call_operand.hbm [shape: f32[1,2,8], index: 18, kind: output, shape index: {}]
  %s19 = sld [smem:[#allocation0]]
  $region114: #{tpu_custom_call.1} parent=0
    _
  %s21 = ssub.s32 1, %s19
  %s22 = scalar_select 0, %s21, %s19
  %v23 = vstv %s15
  %24 = vst [vmem:[#allocation2] sm:$0x1] %v23
  %v25 = vstv %s17
  %26 = vst [vmem:[#allocation3] sm:$0x1] %v25
  $region1: #{tpu_custom_call.1} parent=0
    #allocation4 [shape = 'u8[4096]{0}', space=vmem, size = 0x1000, scoped, tag = 'input window, operand 0, single buffered']
    #allocation5 [shape = 's32[1]{0}', space=sflag, size = 0x4, scoped, tag = 'scoped memory for tpu_custom_call.1']
    #allocation6 [shape = 's32[1]{0}', space=sflag, size = 0x4, scoped, tag = 'scoped memory for tpu_custom_call.1']
    #allocation7 [shape = 'u8[65536]{0}', space=vmem, size = 0x10000, scoped, tag = 'input window, operand 1, single buffered']
    #allocation8 [shape = 's32[1]{0}', space=sflag, size = 0x4, scoped, tag = 'scoped memory for tpu_custom_call.1']
    #allocation9 [shape = 'u8[32768]{0}', space=vmem, size = 0x8000, scoped, tag = 'input window, operand 3, single buffered']
    #allocation10 [shape = 'u8[32768]{0}', space=vmem, size = 0x8000, scoped, tag = 'input window, operand 5, single buffered']
    #allocation11 [shape = 's32[1]{0}', space=sflag, size = 0x4, scoped, tag = 'scoped memory for tpu_custom_call.1']
    #allocation12 [shape = 'u8[32768]{0}', space=vmem, size = 0x8000, scoped, tag = 'input window, operand 7, single buffered']
    #allocation13 [shape = 'u8[32768]{0}', space=vmem, size = 0x8000, scoped, tag = 'input window, operand 9, single buffered']
    #allocation14 [shape = 's32[1]{0}', space=sflag, size = 0x4, scoped, tag = 'scoped memory for tpu_custom_call.1']
    #allocation15 [shape = 'u8[32768]{0}', space=vmem, size = 0x8000, scoped, tag = 'input window, operand 11, single buffered']
    #allocation16 [shape = 'u8[98304]{0}', space=vmem, size = 0x18000, scoped, tag = 'input window, operand 13, single buffered']
    #allocation17 [shape = 's32[1]{0}', space=sflag, size = 0x4, scoped, tag = 'scoped memory for tpu_custom_call.1']
    #allocation18 [shape = 'u8[1024]{0}', space=vmem, size = 0x400, scoped, tag = 'output window, operand 0, single buffered']
    %27 = vsyncpa [#allocation5], 0
    %28 = vsyncpa [#allocation8], 0
    %29 = vsyncpa [#allocation11], 0
    %30 = vsyncpa [#allocation14], 0
    %31 = vsyncpa [#allocation17], 0
    %32 = vsyncpa [#allocation6], 0
    // Predicated region
    $region2: #{tpu_custom_call.1} parent=1 // pred_check
      _
    $region3: #{tpu_custom_call.1} parent=1 // pred_check_branch
      %34 = sbr.rel (0) target = $region5
    $region4: #{tpu_custom_call.1} parent=1 // pred_region
      %36 = vsyncadd [#allocation5], 0
      %s38 = sshll.u32 %s0, 4
      %s39 = int_to_ptr.hbm [resolvable:$true] %s38
      %s40 = sshll.u32 [#allocation4], 4
      %s41 = int_to_ptr.vmem [resolvable:$true] %s40
      %43 = dma.hbm_to_vmem [thread:$0]  %s39, 128, %s41, [#allocation5]
    $region5: #{tpu_custom_call.1} parent=1 // pred_fallthru
      _
    // Predicated region
    $region6: #{tpu_custom_call.1} parent=1 // pred_check
      _
    $region7: #{tpu_custom_call.1} parent=1 // pred_check_branch
      %45 = sbr.rel (0) target = $region9
    $region8: #{tpu_custom_call.1} parent=1 // pred_region
      %47 = vsyncadd [#allocation8], 0
      %s48 = sshll.u32 %s1, 4
      %s49 = int_to_ptr.hbm [resolvable:$true] %s48
      %s50 = sshll.u32 [#allocation7], 4
      %s51 = int_to_ptr.vmem [resolvable:$true] %s50
      %56 = dma.hbm_to_vmem [thread:$0]  %s49, 2048, %s51, [#allocation8], 128, 128, 8
    $region9: #{tpu_custom_call.1} parent=1 // pred_fallthru
      _
    // Predicated region
    $region10: #{tpu_custom_call.1} parent=1 // pred_check
      _
    $region11: #{tpu_custom_call.1} parent=1 // pred_check_branch
      %58 = sbr.rel (0) target = $region13
    $region12: #{tpu_custom_call.1} parent=1 // pred_region
      _
    $region13: #{tpu_custom_call.1} parent=1 // pred_fallthru
      _
    // Predicated region
    $region14: #{tpu_custom_call.1} parent=1 // pred_check
      _
    $region15: #{tpu_custom_call.1} parent=1 // pred_check_branch
      %60 = sbr.rel (0) target = $region17
    $region16: #{tpu_custom_call.1} parent=1 // pred_region
      %62 = vsyncadd [#allocation8], 0
      %s63 = sshll.u32 %s3, 4
      %s64 = int_to_ptr.hbm [resolvable:$true] %s63
      %s65 = sshll.u32 [#allocation9], 4
      %s66 = int_to_ptr.vmem [resolvable:$true] %s65
      %71 = dma.hbm_to_vmem [thread:$0]  %s64, 1024, %s66, [#allocation8], 64, 64, 4
    $region17: #{tpu_custom_call.1} parent=1 // pred_fallthru
      _
    // Predicated region
    $region18: #{tpu_custom_call.1} parent=1 // pred_check
      _
    $region19: #{tpu_custom_call.1} parent=1 // pred_check_branch
      %73 = sbr.rel (0) target = $region21
    $region20: #{tpu_custom_call.1} parent=1 // pred_region
      _
    $region21: #{tpu_custom_call.1} parent=1 // pred_fallthru
      _
    // Predicated region
    $region22: #{tpu_custom_call.1} parent=1 // pred_check
      _
    $region23: #{tpu_custom_call.1} parent=1 // pred_check_branch
      %75 = sbr.rel (0) target = $region25
    $region24: #{tpu_custom_call.1} parent=1 // pred_region
      %77 = vsyncadd [#allocation11], 0
      %s78 = sshll.u32 %s5, 4
      %s79 = int_to_ptr.hbm [resolvable:$true] %s78
      %s80 = sshll.u32 [#allocation10], 4
      %s81 = int_to_ptr.vmem [resolvable:$true] %s80
      %86 = dma.hbm_to_vmem [thread:$0]  %s79, 1024, %s81, [#allocation11], 64, 64, 4
    $region25: #{tpu_custom_call.1} parent=1 // pred_fallthru
      _
    // Predicated region
    $region26: #{tpu_custom_call.1} parent=1 // pred_check
      _
    $region27: #{tpu_custom_call.1} parent=1 // pred_check_branch
      %88 = sbr.rel (0) target = $region29
    $region28: #{tpu_custom_call.1} parent=1 // pred_region
      _
    $region29: #{tpu_custom_call.1} parent=1 // pred_fallthru
      _
    // Predicated region
    $region30: #{tpu_custom_call.1} parent=1 // pred_check
      _
    $region31: #{tpu_custom_call.1} parent=1 // pred_check_branch
      %90 = sbr.rel (0) target = $region33
    $region32: #{tpu_custom_call.1} parent=1 // pred_region
      %92 = vsyncadd [#allocation11], 0
      %s93 = sshll.u32 %s7, 4
      %s94 = int_to_ptr.hbm [resolvable:$true] %s93
      %s95 = sshll.u32 [#allocation12], 4
      %s96 = int_to_ptr.vmem [resolvable:$true] %s95
      %101 = dma.hbm_to_vmem [thread:$0]  %s94, 1024, %s96, [#allocation11], 64, 64, 4
    $region33: #{tpu_custom_call.1} parent=1 // pred_fallthru
      _
    // Predicated region
    $region34: #{tpu_custom_call.1} parent=1 // pred_check
      _
    $region35: #{tpu_custom_call.1} parent=1 // pred_check_branch
      %103 = sbr.rel (0) target = $region37
    $region36: #{tpu_custom_call.1} parent=1 // pred_region
      _
    $region37: #{tpu_custom_call.1} parent=1 // pred_fallthru
      _
    // Predicated region
    $region38: #{tpu_custom_call.1} parent=1 // pred_check
      _
    $region39: #{tpu_custom_call.1} parent=1 // pred_check_branch
      %105 = sbr.rel (0) target = $region41
    $region40: #{tpu_custom_call.1} parent=1 // pred_region
      %107 = vsyncadd [#allocation14], 0
      %s108 = sshll.u32 %s9, 4
      %s109 = int_to_ptr.hbm [resolvable:$true] %s108
      %s110 = sshll.u32 [#allocation13], 4
      %s111 = int_to_ptr.vmem [resolvable:$true] %s110
      %116 = dma.hbm_to_vmem [thread:$0]  %s109, 1024, %s111, [#allocation14], 64, 64, 4
    $region41: #{tpu_custom_call.1} parent=1 // pred_fallthru
      _
    // Predicated region
    $region42: #{tpu_custom_call.1} parent=1 // pred_check
      _
    $region43: #{tpu_custom_call.1} parent=1 // pred_check_branch
      %118 = sbr.rel (0) target = $region45
    $region44: #{tpu_custom_call.1} parent=1 // pred_region
      _
    $region45: #{tpu_custom_call.1} parent=1 // pred_fallthru
      _
    // Predicated region
    $region46: #{tpu_custom_call.1} parent=1 // pred_check
      _
    $region47: #{tpu_custom_call.1} parent=1 // pred_check_branch
      %120 = sbr.rel (0) target = $region49
    $region48: #{tpu_custom_call.1} parent=1 // pred_region
      %122 = vsyncadd [#allocation14], 0
      %s123 = sshll.u32 %s11, 4
      %s124 = int_to_ptr.hbm [resolvable:$true] %s123
      %s125 = sshll.u32 [#allocation15], 4
      %s126 = int_to_ptr.vmem [resolvable:$true] %s125
      %131 = dma.hbm_to_vmem [thread:$0]  %s124, 1024, %s126, [#allocation14], 64, 64, 4
    $region49: #{tpu_custom_call.1} parent=1 // pred_fallthru
      _
    // Predicated region
    $region50: #{tpu_custom_call.1} parent=1 // pred_check
      _
    $region51: #{tpu_custom_call.1} parent=1 // pred_check_branch
      %133 = sbr.rel (0) target = $region53
    $region52: #{tpu_custom_call.1} parent=1 // pred_region
      _
    $region53: #{tpu_custom_call.1} parent=1 // pred_fallthru
      _
    // Predicated region
    $region54: #{tpu_custom_call.1} parent=1 // pred_check
      _
    $region55: #{tpu_custom_call.1} parent=1 // pred_check_branch
      %135 = sbr.rel (0) target = $region57
    $region56: #{tpu_custom_call.1} parent=1 // pred_region
      %137 = vsyncadd [#allocation17], 0
      %s138 = sshll.u32 %s13, 4
      %s139 = int_to_ptr.hbm [resolvable:$true] %s138
      %s140 = sshll.u32 [#allocation16], 4
      %s141 = int_to_ptr.vmem [resolvable:$true] %s140
      %146 = dma.hbm_to_vmem [thread:$0]  %s139, 3072, %s141, [#allocation17], 192, 192, 12
    $region57: #{tpu_custom_call.1} parent=1 // pred_fallthru
      _
    // Predicated region
    $region58: #{tpu_custom_call.1} parent=1 // pred_check
      _
    $region59: #{tpu_custom_call.1} parent=1 // pred_check_branch
      %148 = sbr.rel (0) target = $region61
    $region60: #{tpu_custom_call.1} parent=1 // pred_region
      _
    $region61: #{tpu_custom_call.1} parent=1 // pred_fallthru
      _
    // Predicated region
    $region62: #{tpu_custom_call.1} parent=1 // pred_check
      _
    $region63: #{tpu_custom_call.1} parent=1 // pred_check_branch
      %150 = sbr.rel (0) target = $region65
    $region64: #{tpu_custom_call.1} parent=1 // pred_region
      _
    $region65: #{tpu_custom_call.1} parent=1 // pred_fallthru
      _
    // Predicated region
    $region66: #{tpu_custom_call.1} parent=1 // pred_check
      _
    $region67: #{tpu_custom_call.1} parent=1 // pred_check_branch
      %152 = sbr.rel (0) target = $region69
    $region68: #{tpu_custom_call.1} parent=1 // pred_region
      _
    $region69: #{tpu_custom_call.1} parent=1 // pred_fallthru
      _
    // Predicated region
    $region70: #{tpu_custom_call.1} parent=1 // pred_check
      _
    $region71: #{tpu_custom_call.1} parent=1 // pred_check_branch
      %154 = sbr.rel (0) target = $region73
    $region72: #{tpu_custom_call.1} parent=1 // pred_region
      _
    $region73: #{tpu_custom_call.1} parent=1 // pred_fallthru
      _
    // Predicated region
    $region74: #{tpu_custom_call.1} parent=1 // pred_check
      _
    $region75: #{tpu_custom_call.1} parent=1 // pred_check_branch
      %156 = sbr.rel (0) target = $region77
    $region76: #{tpu_custom_call.1} parent=1 // pred_region
      %158 = dma.done [#allocation5], 128
    $region77: #{tpu_custom_call.1} parent=1 // pred_fallthru
      _
    // Predicated region
    $region78: #{tpu_custom_call.1} parent=1 // pred_check
      _
    $region79: #{tpu_custom_call.1} parent=1 // pred_check_branch
      %160 = sbr.rel (0) target = $region81
    $region80: #{tpu_custom_call.1} parent=1 // pred_region
      %162 = dma.done [#allocation8], 2048
    $region81: #{tpu_custom_call.1} parent=1 // pred_fallthru
      _
    // Predicated region
    $region82: #{tpu_custom_call.1} parent=1 // pred_check
      _
    $region83: #{tpu_custom_call.1} parent=1 // pred_check_branch
      %164 = sbr.rel (0) target = $region85
    $region84: #{tpu_custom_call.1} parent=1 // pred_region
      %166 = dma.done [#allocation8], 1024
    $region85: #{tpu_custom_call.1} parent=1 // pred_fallthru
      _
    // Predicated region
    $region86: #{tpu_custom_call.1} parent=1 // pred_check
      _
    $region87: #{tpu_custom_call.1} parent=1 // pred_check_branch
      %168 = sbr.rel (0) target = $region89
    $region88: #{tpu_custom_call.1} parent=1 // pred_region
      %170 = dma.done [#allocation11], 1024
    $region89: #{tpu_custom_call.1} parent=1 // pred_fallthru
      _
    // Predicated region
    $region90: #{tpu_custom_call.1} parent=1 // pred_check
      _
    $region91: #{tpu_custom_call.1} parent=1 // pred_check_branch
      %172 = sbr.rel (0) target = $region93
    $region92: #{tpu_custom_call.1} parent=1 // pred_region
      %174 = dma.done [#allocation11], 1024
    $region93: #{tpu_custom_call.1} parent=1 // pred_fallthru
      _
    // Predicated region
    $region94: #{tpu_custom_call.1} parent=1 // pred_check
      _
    $region95: #{tpu_custom_call.1} parent=1 // pred_check_branch
      %176 = sbr.rel (0) target = $region97
    $region96: #{tpu_custom_call.1} parent=1 // pred_region
      %178 = dma.done [#allocation14], 1024
    $region97: #{tpu_custom_call.1} parent=1 // pred_fallthru
      _
    // Predicated region
    $region98: #{tpu_custom_call.1} parent=1 // pred_check
      _
    $region99: #{tpu_custom_call.1} parent=1 // pred_check_branch
      %180 = sbr.rel (0) target = $region101
    $region100: #{tpu_custom_call.1} parent=1 // pred_region
      %182 = dma.done [#allocation14], 1024
    $region101: #{tpu_custom_call.1} parent=1 // pred_fallthru
      _
    // Predicated region
    $region102: #{tpu_custom_call.1} parent=1 // pred_check
      _
    $region103: #{tpu_custom_call.1} parent=1 // pred_check_branch
      %184 = sbr.rel (0) target = $region105
    $region104: #{tpu_custom_call.1} parent=1 // pred_region
      %186 = dma.done [#allocation17], 3072
    $region105: #{tpu_custom_call.1} parent=1 // pred_fallthru
      _
    %v187 = vld [vmem:[#allocation4] sm:$0xff]
    %v188 = vpack.c.bf16 %v187, %v187
    %v189 = vld [vmem:[#allocation7] sm:$0xff]
    %v190 = vld [vmem:[#allocation7 + $0x8] sm:$0xff]
    %v191 = vld [vmem:[#allocation7 + $0x10] sm:$0xff]
    %v192 = vld [vmem:[#allocation7 + $0x18] sm:$0xff]
    %v193 = vld [vmem:[#allocation7 + $0x20] sm:$0xff]
    %v194 = vld [vmem:[#allocation7 + $0x28] sm:$0xff]
    %v195 = vld [vmem:[#allocation7 + $0x30] sm:$0xff]
    %v196 = vld [vmem:[#allocation7 + $0x38] sm:$0xff]
    %v197 = vld [vmem:[#allocation7 + $0x40] sm:$0xff]
    %v198 = vld [vmem:[#allocation7 + $0x48] sm:$0xff]
    %v199 = vld [vmem:[#allocation7 + $0x50] sm:$0xff]
    %v200 = vld [vmem:[#allocation7 + $0x58] sm:$0xff]
    %v201 = vld [vmem:[#allocation7 + $0x60] sm:$0xff]
    %v202 = vld [vmem:[#allocation7 + $0x68] sm:$0xff]
    %v203 = vld [vmem:[#allocation7 + $0x70] sm:$0xff]
    %v204 = vld [vmem:[#allocation7 + $0x78] sm:$0xff]
    %v205 = vld [vmem:[%s2] sm:$0x3]
    %v207 = vperm.slane %v205, 0
    %v208 = vperm.slane %v205, 1
    %v227 = vunpack.c.l.b16 %v189
    %v228 = vunpack.c.h.b16 %v189
    %v229 = vunpack.c.l.b16 %v190
    %v230 = vunpack.c.h.b16 %v190
    %v231 = vunpack.c.l.b16 %v191
    %v232 = vunpack.c.h.b16 %v191
    %v233 = vunpack.c.l.b16 %v192
    %v234 = vunpack.c.h.b16 %v192
    %v235 = vunpack.c.l.b16 %v193
    %v236 = vunpack.c.h.b16 %v193
    %v237 = vunpack.c.l.b16 %v194
    %v238 = vunpack.c.h.b16 %v194
    %v239 = vunpack.c.l.b16 %v195
    %v240 = vunpack.c.h.b16 %v195
    %v241 = vunpack.c.l.b16 %v196
    %v242 = vunpack.c.h.b16 %v196
    %v243 = vunpack.c.l.b16 %v197
    %v244 = vunpack.c.h.b16 %v197
    %v245 = vunpack.c.l.b16 %v198
    %v246 = vunpack.c.h.b16 %v198
    %v247 = vunpack.c.l.b16 %v199
    %v248 = vunpack.c.h.b16 %v199
    %v249 = vunpack.c.l.b16 %v200
    %v250 = vunpack.c.h.b16 %v200
    %v251 = vunpack.c.l.b16 %v201
    %v252 = vunpack.c.h.b16 %v201
    %v253 = vunpack.c.l.b16 %v202
    %v254 = vunpack.c.h.b16 %v202
    %v255 = vunpack.c.l.b16 %v203
    %v256 = vunpack.c.h.b16 %v203
    %v257 = vunpack.c.l.b16 %v204
    %v258 = vunpack.c.h.b16 %v204
    %v259 = vpack.c.b16 %v229, %v227
    %v260 = vpack.c.b16 %v230, %v228
    %v261 = vpack.c.b16 %v233, %v231
    %v262 = vpack.c.b16 %v234, %v232
    %v263 = vpack.c.b16 %v237, %v235
    %v264 = vpack.c.b16 %v238, %v236
    %v265 = vpack.c.b16 %v241, %v239
    %v266 = vpack.c.b16 %v242, %v240
    %v267 = vpack.c.b16 %v245, %v243
    %v268 = vpack.c.b16 %v246, %v244
    %v269 = vpack.c.b16 %v249, %v247
    %v270 = vpack.c.b16 %v250, %v248
    %v271 = vpack.c.b16 %v253, %v251
    %v272 = vpack.c.b16 %v254, %v252
    %v273 = vpack.c.b16 %v257, %v255
    %v274 = vpack.c.b16 %v258, %v256
    %291 = vmatpush.bf16.msra.mxu0 %v273
    %292 = vmatpush.bf16.msra.mxu0 %v271
    %293 = vmatpush.bf16.msra.mxu0 %v269
    %294 = vmatpush.bf16.msra.mxu0 %v267
    %295 = vmatpush.bf16.msra.mxu0 %v265
    %296 = vmatpush.bf16.msra.mxu0 %v263
    %297 = vmatpush.bf16.msra.mxu0 %v261
    %298 = vmatpush.bf16.msra.mxu0 %v259
    %299 = vmatmul.bf16.gmra.mxu0 %v188
    %v300 = vpop.f32.mrf.mxu0
    %v301 = vadd.f32 %v207, %v300
    %v302 = vpop.f32.mrf.mxu0
    %303 = vdwg.mxu0
    %304 = vmatpush.bf16.msra.mxu0 %v274
    %305 = vmatpush.bf16.msra.mxu0 %v272
    %306 = vmatpush.bf16.msra.mxu0 %v270
    %307 = vmatpush.bf16.msra.mxu0 %v268
    %308 = vmatpush.bf16.msra.mxu0 %v266
    %309 = vmatpush.bf16.msra.mxu0 %v264
    %310 = vmatpush.bf16.msra.mxu0 %v262
    %311 = vmatpush.bf16.msra.mxu0 %v260
    %312 = vmatmul.bf16.gmra.mxu0 %v188
    %v313 = vpop.f32.mrf.mxu0
    %v314 = vadd.f32 %v208, %v313
    %v315 = vpop.f32.mrf.mxu0
    %316 = vdwg.mxu0
    %v317 = vmax.f32 %v301, 0.0
    %v318 = vmax.f32 %v314, 0.0
    %v319 = vpack.c.bf16 %v317, %v317
    %v320 = vld [vmem:[#allocation9] sm:$0xf]
    %v321 = vld [vmem:[#allocation9 + $0x4] sm:$0xf]
    %v322 = vld [vmem:[#allocation9 + $0x8] sm:$0xf]
    %v323 = vld [vmem:[#allocation9 + $0xc] sm:$0xf]
    %v324 = vld [vmem:[#allocation9 + $0x10] sm:$0xf]
    %v325 = vld [vmem:[#allocation9 + $0x14] sm:$0xf]
    %v326 = vld [vmem:[#allocation9 + $0x18] sm:$0xf]
    %v327 = vld [vmem:[#allocation9 + $0x1c] sm:$0xf]
    %v328 = vld [vmem:[#allocation9 + $0x20] sm:$0xf]
    %v329 = vld [vmem:[#allocation9 + $0x24] sm:$0xf]
    %v330 = vld [vmem:[#allocation9 + $0x28] sm:$0xf]
    %v331 = vld [vmem:[#allocation9 + $0x2c] sm:$0xf]
    %v332 = vld [vmem:[#allocation9 + $0x30] sm:$0xf]
    %v333 = vld [vmem:[#allocation9 + $0x34] sm:$0xf]
    %v334 = vld [vmem:[#allocation9 + $0x38] sm:$0xf]
    %v335 = vld [vmem:[#allocation9 + $0x3c] sm:$0xf]
    %v336 = vld [vmem:[%s4] sm:$0x1]
    %v338 = vperm.slane %v336, 0
    %v356 = vunpack.c.l.b16 %v320
    %v357 = vunpack.c.l.b16 %v321
    %v358 = vunpack.c.l.b16 %v322
    %v359 = vunpack.c.l.b16 %v323
    %v360 = vunpack.c.l.b16 %v324
    %v361 = vunpack.c.l.b16 %v325
    %v362 = vunpack.c.l.b16 %v326
    %v363 = vunpack.c.l.b16 %v327
    %v364 = vunpack.c.l.b16 %v328
    %v365 = vunpack.c.l.b16 %v329
    %v366 = vunpack.c.l.b16 %v330
    %v367 = vunpack.c.l.b16 %v331
    %v368 = vunpack.c.l.b16 %v332
    %v369 = vunpack.c.l.b16 %v333
    %v370 = vunpack.c.l.b16 %v334
    %v371 = vunpack.c.l.b16 %v335
    %v372 = vpack.c.b16 %v357, %v356
    %v373 = vpack.c.b16 %v359, %v358
    %v374 = vpack.c.b16 %v361, %v360
    %v375 = vpack.c.b16 %v363, %v362
    %v376 = vpack.c.b16 %v365, %v364
    %v377 = vpack.c.b16 %v367, %v366
    %v378 = vpack.c.b16 %v369, %v368
    %v379 = vpack.c.b16 %v371, %v370
    %388 = vmatpush.bf16.msra.mxu0 %v379
    %389 = vmatpush.bf16.msra.mxu0 %v378
    %390 = vmatpush.bf16.msra.mxu0 %v377
    %391 = vmatpush.bf16.msra.mxu0 %v376
    %392 = vmatpush.bf16.msra.mxu0 %v375
    %393 = vmatpush.bf16.msra.mxu0 %v374
    %394 = vmatpush.bf16.msra.mxu0 %v373
    %395 = vmatpush.bf16.msra.mxu0 %v372
    %396 = vmatmul.bf16.gmra.mxu0 %v319
    %v397 = vpop.f32.mrf.mxu0
    %v398 = vadd.f32 %v338, %v397
    %v399 = vpop.f32.mrf.mxu0
    %400 = vdwg.mxu0
    %v401 = vmax.f32 %v398, 0.0
    %v402 = vpack.c.bf16 %v401, %v401
    %v403 = vld [vmem:[#allocation10] sm:$0xf]
    %v404 = vld [vmem:[#allocation10 + $0x4] sm:$0xf]
    %v405 = vld [vmem:[#allocation10 + $0x8] sm:$0xf]
    %v406 = vld [vmem:[#allocation10 + $0xc] sm:$0xf]
    %v407 = vld [vmem:[#allocation10 + $0x10] sm:$0xf]
    %v408 = vld [vmem:[#allocation10 + $0x14] sm:$0xf]
    %v409 = vld [vmem:[#allocation10 + $0x18] sm:$0xf]
    %v410 = vld [vmem:[#allocation10 + $0x1c] sm:$0xf]
    %v411 = vld [vmem:[#allocation10 + $0x20] sm:$0xf]
    %v412 = vld [vmem:[#allocation10 + $0x24] sm:$0xf]
    %v413 = vld [vmem:[#allocation10 + $0x28] sm:$0xf]
    %v414 = vld [vmem:[#allocation10 + $0x2c] sm:$0xf]
    %v415 = vld [vmem:[#allocation10 + $0x30] sm:$0xf]
    %v416 = vld [vmem:[#allocation10 + $0x34] sm:$0xf]
    %v417 = vld [vmem:[#allocation10 + $0x38] sm:$0xf]
    %v418 = vld [vmem:[#allocation10 + $0x3c] sm:$0xf]
    %v419 = vld [vmem:[%s6] sm:$0x1]
    %v421 = vperm.slane %v419, 0
    %v439 = vunpack.c.l.b16 %v403
    %v440 = vunpack.c.l.b16 %v404
    %v441 = vunpack.c.l.b16 %v405
    %v442 = vunpack.c.l.b16 %v406
    %v443 = vunpack.c.l.b16 %v407
    %v444 = vunpack.c.l.b16 %v408
    %v445 = vunpack.c.l.b16 %v409
    %v446 = vunpack.c.l.b16 %v410
    %v447 = vunpack.c.l.b16 %v411
    %v448 = vunpack.c.l.b16 %v412
    %v449 = vunpack.c.l.b16 %v413
    %v450 = vunpack.c.l.b16 %v414
    %v451 = vunpack.c.l.b16 %v415
    %v452 = vunpack.c.l.b16 %v416
    %v453 = vunpack.c.l.b16 %v417
    %v454 = vunpack.c.l.b16 %v418
    %v455 = vpack.c.b16 %v440, %v439
    %v456 = vpack.c.b16 %v442, %v441
    %v457 = vpack.c.b16 %v444, %v443
    %v458 = vpack.c.b16 %v446, %v445
    %v459 = vpack.c.b16 %v448, %v447
    %v460 = vpack.c.b16 %v450, %v449
    %v461 = vpack.c.b16 %v452, %v451
    %v462 = vpack.c.b16 %v454, %v453
    %471 = vmatpush.bf16.msra.mxu0 %v462
    %472 = vmatpush.bf16.msra.mxu0 %v461
    %473 = vmatpush.bf16.msra.mxu0 %v460
    %474 = vmatpush.bf16.msra.mxu0 %v459
    %475 = vmatpush.bf16.msra.mxu0 %v458
    %476 = vmatpush.bf16.msra.mxu0 %v457
    %477 = vmatpush.bf16.msra.mxu0 %v456
    %478 = vmatpush.bf16.msra.mxu0 %v455
    %479 = vmatmul.bf16.gmra.mxu0 %v402
    %v480 = vpop.f32.mrf.mxu0
    %v481 = vadd.f32 %v421, %v480
    %v482 = vpop.f32.mrf.mxu0
    %483 = vdwg.mxu0
    %v484 = vmax.f32 %v481, 0.0
    %v485 = vpack.c.bf16 %v318, %v318
    %v486 = vld [vmem:[#allocation12] sm:$0xf]
    %v487 = vld [vmem:[#allocation12 + $0x4] sm:$0xf]
    %v488 = vld [vmem:[#allocation12 + $0x8] sm:$0xf]
    %v489 = vld [vmem:[#allocation12 + $0xc] sm:$0xf]
    %v490 = vld [vmem:[#allocation12 + $0x10] sm:$0xf]
    %v491 = vld [vmem:[#allocation12 + $0x14] sm:$0xf]
    %v492 = vld [vmem:[#allocation12 + $0x18] sm:$0xf]
    %v493 = vld [vmem:[#allocation12 + $0x1c] sm:$0xf]
    %v494 = vld [vmem:[#allocation12 + $0x20] sm:$0xf]
    %v495 = vld [vmem:[#allocation12 + $0x24] sm:$0xf]
    %v496 = vld [vmem:[#allocation12 + $0x28] sm:$0xf]
    %v497 = vld [vmem:[#allocation12 + $0x2c] sm:$0xf]
    %v498 = vld [vmem:[#allocation12 + $0x30] sm:$0xf]
    %v499 = vld [vmem:[#allocation12 + $0x34] sm:$0xf]
    %v500 = vld [vmem:[#allocation12 + $0x38] sm:$0xf]
    %v501 = vld [vmem:[#allocation12 + $0x3c] sm:$0xf]
    %v502 = vld [vmem:[%s8] sm:$0x1]
    %v504 = vperm.slane %v502, 0
    %v522 = vunpack.c.l.b16 %v486
    %v523 = vunpack.c.l.b16 %v487
    %v524 = vunpack.c.l.b16 %v488
    %v525 = vunpack.c.l.b16 %v489
    %v526 = vunpack.c.l.b16 %v490
    %v527 = vunpack.c.l.b16 %v491
    %v528 = vunpack.c.l.b16 %v492
    %v529 = vunpack.c.l.b16 %v493
    %v530 = vunpack.c.l.b16 %v494
    %v531 = vunpack.c.l.b16 %v495
    %v532 = vunpack.c.l.b16 %v496
    %v533 = vunpack.c.l.b16 %v497
    %v534 = vunpack.c.l.b16 %v498
    %v535 = vunpack.c.l.b16 %v499
    %v536 = vunpack.c.l.b16 %v500
    %v537 = vunpack.c.l.b16 %v501
    %v538 = vpack.c.b16 %v523, %v522
    %v539 = vpack.c.b16 %v525, %v524
    %v540 = vpack.c.b16 %v527, %v526
    %v541 = vpack.c.b16 %v529, %v528
    %v542 = vpack.c.b16 %v531, %v530
    %v543 = vpack.c.b16 %v533, %v532
    %v544 = vpack.c.b16 %v535, %v534
    %v545 = vpack.c.b16 %v537, %v536
    %554 = vmatpush.bf16.msra.mxu0 %v545
    %555 = vmatpush.bf16.msra.mxu0 %v544
    %556 = vmatpush.bf16.msra.mxu0 %v543
    %557 = vmatpush.bf16.msra.mxu0 %v542
    %558 = vmatpush.bf16.msra.mxu0 %v541
    %559 = vmatpush.bf16.msra.mxu0 %v540
    %560 = vmatpush.bf16.msra.mxu0 %v539
    %561 = vmatpush.bf16.msra.mxu0 %v538
    %562 = vmatmul.bf16.gmra.mxu0 %v485
    %v563 = vpop.f32.mrf.mxu0
    %v564 = vadd.f32 %v504, %v563
    %v565 = vpop.f32.mrf.mxu0
    %566 = vdwg.mxu0
    %v567 = vmax.f32 %v564, 0.0
    %v568 = vpack.c.bf16 %v567, %v567
    %v569 = vld [vmem:[#allocation13] sm:$0xf]
    %v570 = vld [vmem:[#allocation13 + $0x4] sm:$0xf]
    %v571 = vld [vmem:[#allocation13 + $0x8] sm:$0xf]
    %v572 = vld [vmem:[#allocation13 + $0xc] sm:$0xf]
    %v573 = vld [vmem:[#allocation13 + $0x10] sm:$0xf]
    %v574 = vld [vmem:[#allocation13 + $0x14] sm:$0xf]
    %v575 = vld [vmem:[#allocation13 + $0x18] sm:$0xf]
    %v576 = vld [vmem:[#allocation13 + $0x1c] sm:$0xf]
    %v577 = vld [vmem:[#allocation13 + $0x20] sm:$0xf]
    %v578 = vld [vmem:[#allocation13 + $0x24] sm:$0xf]
    %v579 = vld [vmem:[#allocation13 + $0x28] sm:$0xf]
    %v580 = vld [vmem:[#allocation13 + $0x2c] sm:$0xf]
    %v581 = vld [vmem:[#allocation13 + $0x30] sm:$0xf]
    %v582 = vld [vmem:[#allocation13 + $0x34] sm:$0xf]
    %v583 = vld [vmem:[#allocation13 + $0x38] sm:$0xf]
    %v584 = vld [vmem:[#allocation13 + $0x3c] sm:$0xf]
    %v585 = vld [vmem:[%s10] sm:$0x1]
    %v587 = vperm.slane %v585, 0
    %v605 = vunpack.c.l.b16 %v569
    %v606 = vunpack.c.l.b16 %v570
    %v607 = vunpack.c.l.b16 %v571
    %v608 = vunpack.c.l.b16 %v572
    %v609 = vunpack.c.l.b16 %v573
    %v610 = vunpack.c.l.b16 %v574
    %v611 = vunpack.c.l.b16 %v575
    %v612 = vunpack.c.l.b16 %v576
    %v613 = vunpack.c.l.b16 %v577
    %v614 = vunpack.c.l.b16 %v578
    %v615 = vunpack.c.l.b16 %v579
    %v616 = vunpack.c.l.b16 %v580
    %v617 = vunpack.c.l.b16 %v581
    %v618 = vunpack.c.l.b16 %v582
    %v619 = vunpack.c.l.b16 %v583
    %v620 = vunpack.c.l.b16 %v584
    %v621 = vpack.c.b16 %v606, %v605
    %v622 = vpack.c.b16 %v608, %v607
    %v623 = vpack.c.b16 %v610, %v609
    %v624 = vpack.c.b16 %v612, %v611
    %v625 = vpack.c.b16 %v614, %v613
    %v626 = vpack.c.b16 %v616, %v615
    %v627 = vpack.c.b16 %v618, %v617
    %v628 = vpack.c.b16 %v620, %v619
    %637 = vmatpush.bf16.msra.mxu0 %v628
    %638 = vmatpush.bf16.msra.mxu0 %v627
    %639 = vmatpush.bf16.msra.mxu0 %v626
    %640 = vmatpush.bf16.msra.mxu0 %v625
    %641 = vmatpush.bf16.msra.mxu0 %v624
    %642 = vmatpush.bf16.msra.mxu0 %v623
    %643 = vmatpush.bf16.msra.mxu0 %v622
    %644 = vmatpush.bf16.msra.mxu0 %v621
    %645 = vmatmul.bf16.gmra.mxu0 %v568
    %v646 = vpop.f32.mrf.mxu0
    %v647 = vadd.f32 %v587, %v646
    %v648 = vpop.f32.mrf.mxu0
    %649 = vdwg.mxu0
    %v650 = vmax.f32 %v647, 0.0
    %v651 = vpack.c.bf16 %v484, %v484
    %v652 = vld [vmem:[#allocation15] sm:$0xf]
    %v653 = vld [vmem:[#allocation15 + $0x4] sm:$0xf]
    %v654 = vld [vmem:[#allocation15 + $0x8] sm:$0xf]
    %v655 = vld [vmem:[#allocation15 + $0xc] sm:$0xf]
    %v656 = vld [vmem:[#allocation15 + $0x10] sm:$0xf]
    %v657 = vld [vmem:[#allocation15 + $0x14] sm:$0xf]
    %v658 = vld [vmem:[#allocation15 + $0x18] sm:$0xf]
    %v659 = vld [vmem:[#allocation15 + $0x1c] sm:$0xf]
    %v660 = vld [vmem:[#allocation15 + $0x20] sm:$0xf]
    %v661 = vld [vmem:[#allocation15 + $0x24] sm:$0xf]
    %v662 = vld [vmem:[#allocation15 + $0x28] sm:$0xf]
    %v663 = vld [vmem:[#allocation15 + $0x2c] sm:$0xf]
    %v664 = vld [vmem:[#allocation15 + $0x30] sm:$0xf]
    %v665 = vld [vmem:[#allocation15 + $0x34] sm:$0xf]
    %v666 = vld [vmem:[#allocation15 + $0x38] sm:$0xf]
    %v667 = vld [vmem:[#allocation15 + $0x3c] sm:$0xf]
    %v668 = vld [vmem:[%s12] sm:$0x1]
    %v670 = vperm.slane %v668, 0
    %v688 = vunpack.c.l.b16 %v652
    %v689 = vunpack.c.l.b16 %v653
    %v690 = vunpack.c.l.b16 %v654
    %v691 = vunpack.c.l.b16 %v655
    %v692 = vunpack.c.l.b16 %v656
    %v693 = vunpack.c.l.b16 %v657
    %v694 = vunpack.c.l.b16 %v658
    %v695 = vunpack.c.l.b16 %v659
    %v696 = vunpack.c.l.b16 %v660
    %v697 = vunpack.c.l.b16 %v661
    %v698 = vunpack.c.l.b16 %v662
    %v699 = vunpack.c.l.b16 %v663
    %v700 = vunpack.c.l.b16 %v664
    %v701 = vunpack.c.l.b16 %v665
    %v702 = vunpack.c.l.b16 %v666
    %v703 = vunpack.c.l.b16 %v667
    %v704 = vpack.c.b16 %v689, %v688
    %v705 = vpack.c.b16 %v691, %v690
    %v706 = vpack.c.b16 %v693, %v692
    %v707 = vpack.c.b16 %v695, %v694
    %v708 = vpack.c.b16 %v697, %v696
    %v709 = vpack.c.b16 %v699, %v698
    %v710 = vpack.c.b16 %v701, %v700
    %v711 = vpack.c.b16 %v703, %v702
    %720 = vmatpush.bf16.msra.mxu0 %v711
    %721 = vmatpush.bf16.msra.mxu0 %v710
    %722 = vmatpush.bf16.msra.mxu0 %v709
    %723 = vmatpush.bf16.msra.mxu0 %v708
    %724 = vmatpush.bf16.msra.mxu0 %v707
    %725 = vmatpush.bf16.msra.mxu0 %v706
    %726 = vmatpush.bf16.msra.mxu0 %v705
    %727 = vmatpush.bf16.msra.mxu0 %v704
    %728 = vmatmul.bf16.gmra.mxu0 %v651
    %v729 = vpop.f32.mrf.mxu0
    %v730 = vadd.f32 %v670, %v729
    %v731 = vpop.f32.mrf.mxu0
    %732 = vdwg.mxu0
    %v733 = vmax.f32 %v730, 0.0
    %v734 = vpack.c.bf16 %v650, %v650
    %v735 = vld [vmem:[#allocation16] sm:$0xff]
    %v736 = vld [vmem:[#allocation16 + $0x8] sm:$0xf]
    %v737 = vld [vmem:[#allocation16 + $0xc] sm:$0xff]
    %v738 = vld [vmem:[#allocation16 + $0x14] sm:$0xf]
    %v739 = vld [vmem:[#allocation16 + $0x18] sm:$0xff]
    %v740 = vld [vmem:[#allocation16 + $0x20] sm:$0xf]
    %v741 = vld [vmem:[#allocation16 + $0x24] sm:$0xff]
    %v742 = vld [vmem:[#allocation16 + $0x2c] sm:$0xf]
    %v743 = vld [vmem:[#allocation16 + $0x30] sm:$0xff]
    %v744 = vld [vmem:[#allocation16 + $0x38] sm:$0xf]
    %v745 = vld [vmem:[#allocation16 + $0x3c] sm:$0xff]
    %v746 = vld [vmem:[#allocation16 + $0x44] sm:$0xf]
    %v747 = vld [vmem:[#allocation16 + $0x48] sm:$0xff]
    %v748 = vld [vmem:[#allocation16 + $0x50] sm:$0xf]
    %v749 = vld [vmem:[#allocation16 + $0x54] sm:$0xff]
    %v750 = vld [vmem:[#allocation16 + $0x5c] sm:$0xf]
    %v751 = vld [vmem:[#allocation16 + $0x60] sm:$0xff]
    %v752 = vld [vmem:[#allocation16 + $0x68] sm:$0xf]
    %v753 = vld [vmem:[#allocation16 + $0x6c] sm:$0xff]
    %v754 = vld [vmem:[#allocation16 + $0x74] sm:$0xf]
    %v755 = vld [vmem:[#allocation16 + $0x78] sm:$0xff]
    %v756 = vld [vmem:[#allocation16 + $0x80] sm:$0xf]
    %v757 = vld [vmem:[#allocation16 + $0x84] sm:$0xff]
    %v758 = vld [vmem:[#allocation16 + $0x8c] sm:$0xf]
    %v759 = vld [vmem:[#allocation16 + $0x90] sm:$0xff]
    %v760 = vld [vmem:[#allocation16 + $0x98] sm:$0xf]
    %v761 = vld [vmem:[#allocation16 + $0x9c] sm:$0xff]
    %v762 = vld [vmem:[#allocation16 + $0xa4] sm:$0xf]
    %v763 = vld [vmem:[#allocation16 + $0xa8] sm:$0xff]
    %v764 = vld [vmem:[#allocation16 + $0xb0] sm:$0xf]
    %v765 = vld [vmem:[#allocation16 + $0xb4] sm:$0xff]
    %v766 = vld [vmem:[#allocation16 + $0xbc] sm:$0xf]
    %v799 = vunpack.c.l.b16 %v735
    %v800 = vunpack.c.h.b16 %v735
    %v801 = vunpack.c.l.b16 %v736
    %v802 = vunpack.c.l.b16 %v737
    %v803 = vunpack.c.h.b16 %v737
    %v804 = vunpack.c.l.b16 %v738
    %v805 = vunpack.c.l.b16 %v739
    %v806 = vunpack.c.h.b16 %v739
    %v807 = vunpack.c.l.b16 %v740
    %v808 = vunpack.c.l.b16 %v741
    %v809 = vunpack.c.h.b16 %v741
    %v810 = vunpack.c.l.b16 %v742
    %v811 = vunpack.c.l.b16 %v743
    %v812 = vunpack.c.h.b16 %v743
    %v813 = vunpack.c.l.b16 %v744
    %v814 = vunpack.c.l.b16 %v745
    %v815 = vunpack.c.h.b16 %v745
    %v816 = vunpack.c.l.b16 %v746
    %v817 = vunpack.c.l.b16 %v747
    %v818 = vunpack.c.h.b16 %v747
    %v819 = vunpack.c.l.b16 %v748
    %v820 = vunpack.c.l.b16 %v749
    %v821 = vunpack.c.h.b16 %v749
    %v822 = vunpack.c.l.b16 %v750
    %v823 = vunpack.c.l.b16 %v751
    %v824 = vunpack.c.h.b16 %v751
    %v825 = vunpack.c.l.b16 %v752
    %v826 = vunpack.c.l.b16 %v753
    %v827 = vunpack.c.h.b16 %v753
    %v828 = vunpack.c.l.b16 %v754
    %v829 = vunpack.c.l.b16 %v755
    %v830 = vunpack.c.h.b16 %v755
    %v831 = vunpack.c.l.b16 %v756
    %v832 = vunpack.c.l.b16 %v757
    %v833 = vunpack.c.h.b16 %v757
    %v834 = vunpack.c.l.b16 %v758
    %v835 = vunpack.c.l.b16 %v759
    %v836 = vunpack.c.h.b16 %v759
    %v837 = vunpack.c.l.b16 %v760
    %v838 = vunpack.c.l.b16 %v761
    %v839 = vunpack.c.h.b16 %v761
    %v840 = vunpack.c.l.b16 %v762
    %v841 = vunpack.c.l.b16 %v763
    %v842 = vunpack.c.h.b16 %v763
    %v843 = vunpack.c.l.b16 %v764
    %v844 = vunpack.c.l.b16 %v765
    %v845 = vunpack.c.h.b16 %v765
    %v846 = vunpack.c.l.b16 %v766
    %v847 = vpack.c.b16 %v802, %v799
    %v848 = vpack.c.b16 %v803, %v800
    %v849 = vpack.c.b16 %v804, %v801
    %v850 = vpack.c.b16 %v808, %v805
    %v851 = vpack.c.b16 %v809, %v806
    %v852 = vpack.c.b16 %v810, %v807
    %v853 = vpack.c.b16 %v814, %v811
    %v854 = vpack.c.b16 %v815, %v812
    %v855 = vpack.c.b16 %v816, %v813
    %v856 = vpack.c.b16 %v820, %v817
    %v857 = vpack.c.b16 %v821, %v818
    %v858 = vpack.c.b16 %v822, %v819
    %v859 = vpack.c.b16 %v826, %v823
    %v860 = vpack.c.b16 %v827, %v824
    %v861 = vpack.c.b16 %v828, %v825
    %v862 = vpack.c.b16 %v832, %v829
    %v863 = vpack.c.b16 %v833, %v830
    %v864 = vpack.c.b16 %v834, %v831
    %v865 = vpack.c.b16 %v838, %v835
    %v866 = vpack.c.b16 %v839, %v836
    %v867 = vpack.c.b16 %v840, %v837
    %v868 = vpack.c.b16 %v844, %v841
    %v869 = vpack.c.b16 %v845, %v842
    %v870 = vpack.c.b16 %v846, %v843
    %895 = vmatpush.bf16.msra.mxu0 %v868
    %896 = vmatpush.bf16.msra.mxu0 %v865
    %897 = vmatpush.bf16.msra.mxu0 %v862
    %898 = vmatpush.bf16.msra.mxu0 %v859
    %899 = vmatpush.bf16.msra.mxu0 %v856
    %900 = vmatpush.bf16.msra.mxu0 %v853
    %901 = vmatpush.bf16.msra.mxu0 %v850
    %902 = vmatpush.bf16.msra.mxu0 %v847
    %903 = vmatmul.bf16.gmra.mxu0 %v734
    %v904 = vpop.f32.mrf.mxu0
    %v905 = vadd.f32 0.0, %v904
    %v906 = vpop.f32.mrf.mxu0
    %907 = vdwg.mxu0
    %908 = vmatpush.bf16.msra.mxu0 %v869
    %909 = vmatpush.bf16.msra.mxu0 %v866
    %910 = vmatpush.bf16.msra.mxu0 %v863
    %911 = vmatpush.bf16.msra.mxu0 %v860
    %912 = vmatpush.bf16.msra.mxu0 %v857
    %913 = vmatpush.bf16.msra.mxu0 %v854
    %914 = vmatpush.bf16.msra.mxu0 %v851
    %915 = vmatpush.bf16.msra.mxu0 %v848
    %916 = vmatmul.bf16.gmra.mxu0 %v734
    %v917 = vpop.f32.mrf.mxu0
    %v918 = vadd.f32 0.0, %v917
    %v919 = vpop.f32.mrf.mxu0
    %920 = vdwg.mxu0
    %921 = vmatpush.bf16.msra.mxu0 %v870
    %922 = vmatpush.bf16.msra.mxu0 %v867
    %923 = vmatpush.bf16.msra.mxu0 %v864
    %924 = vmatpush.bf16.msra.mxu0 %v861
    %925 = vmatpush.bf16.msra.mxu0 %v858
    %926 = vmatpush.bf16.msra.mxu0 %v855
    %927 = vmatpush.bf16.msra.mxu0 %v852
    %928 = vmatpush.bf16.msra.mxu0 %v849
    %929 = vmatmul.bf16.gmra.mxu0 %v734
    %v930 = vpop.f32.mrf.mxu0
    %v931 = vadd.f32 0.0, %v930
    %v932 = vpop.f32.mrf.mxu0
    %933 = vdwg.mxu0
    %v934 = vpack.c.bf16 %v733, %v733
    %935 = vmatpush.bf16.msra.mxu0 %v868
    %936 = vmatpush.bf16.msra.mxu0 %v865
    %937 = vmatpush.bf16.msra.mxu0 %v862
    %938 = vmatpush.bf16.msra.mxu0 %v859
    %939 = vmatpush.bf16.msra.mxu0 %v856
    %940 = vmatpush.bf16.msra.mxu0 %v853
    %941 = vmatpush.bf16.msra.mxu0 %v850
    %942 = vmatpush.bf16.msra.mxu0 %v847
    %943 = vmatmul.bf16.gmra.mxu0 %v934
    %v944 = vpop.f32.mrf.mxu0
    %v945 = vadd.f32 0.0, %v944
    %v946 = vpop.f32.mrf.mxu0
    %947 = vdwg.mxu0
    %948 = vmatpush.bf16.msra.mxu0 %v869
    %949 = vmatpush.bf16.msra.mxu0 %v866
    %950 = vmatpush.bf16.msra.mxu0 %v863
    %951 = vmatpush.bf16.msra.mxu0 %v860
    %952 = vmatpush.bf16.msra.mxu0 %v857
    %953 = vmatpush.bf16.msra.mxu0 %v854
    %954 = vmatpush.bf16.msra.mxu0 %v851
    %955 = vmatpush.bf16.msra.mxu0 %v848
    %956 = vmatmul.bf16.gmra.mxu0 %v934
    %v957 = vpop.f32.mrf.mxu0
    %v958 = vadd.f32 0.0, %v957
    %v959 = vpop.f32.mrf.mxu0
    %960 = vdwg.mxu0
    %961 = vmatpush.bf16.msra.mxu0 %v870
    %962 = vmatpush.bf16.msra.mxu0 %v867
    %963 = vmatpush.bf16.msra.mxu0 %v864
    %964 = vmatpush.bf16.msra.mxu0 %v861
    %965 = vmatpush.bf16.msra.mxu0 %v858
    %966 = vmatpush.bf16.msra.mxu0 %v855
    %967 = vmatpush.bf16.msra.mxu0 %v852
    %968 = vmatpush.bf16.msra.mxu0 %v849
    %969 = vmatmul.bf16.gmra.mxu0 %v934
    %v970 = vpop.f32.mrf.mxu0
    %v971 = vadd.f32 0.0, %v970
    %v972 = vpop.f32.mrf.mxu0
    %973 = vdwg.mxu0
    %v974 = vmul.f32 %v905, %v918
    %975 = vadd.xlane.f32.xlu0 %v974
    %v976 = vpop.xlane.xlu0 %975
    %v977 = vmul.f32 %v905, %v958
    %978 = vadd.xlane.f32.xlu0 %v977
    %v979 = vpop.xlane.xlu0 %978
    %v980 = vmul.f32 %v945, %v918
    %981 = vadd.xlane.f32.xlu0 %v980
    %v982 = vpop.xlane.xlu0 %981
    %v983 = vmul.f32 %v945, %v958
    %984 = vadd.xlane.f32.xlu0 %v983
    %v985 = vpop.xlane.xlu0 %984
    %v986 = vmax.f32 %v976, %v979
    %v987 = vsub.f32 %v976, %v986
    %v988 = vmul.f32 %v987, 1.442695
    %v989 = vpow.pop %v988
    %v990 = vsub.f32 %v979, %v986
    %v991 = vmul.f32 %v990, 1.442695
    %v992 = vpow.pop %v991
    %v993 = vadd.f32 %v989, %v992
    %v994 = vrcp.pop %v993
    %v995 = vmax.f32 %v982, %v985
    %v996 = vsub.f32 %v982, %v995
    %v997 = vmul.f32 %v996, 1.442695
    %v998 = vpow.pop %v997
    %v999 = vsub.f32 %v985, %v995
    %v1000 = vmul.f32 %v999, 1.442695
    %v1001 = vpow.pop %v1000
    %v1002 = vadd.f32 %v998, %v1001
    %v1003 = vrcp.pop %v1002
    %v1004 = vmul.f32 %v989, %v994
    %v1005 = vmul.f32 %v1004, %v931
    %v1006 = vmul.f32 %v992, %v994
    %v1007 = vmul.f32 %v1006, %v971
    %v1008 = vadd.f32 %v1005, %v1007
    %v1009 = vadd.f32 %v1008, %v650
    %v1010 = vmax.f32 %v1009, 0.0
    %v1011 = vmul.f32 %v998, %v1003
    %v1012 = vmul.f32 %v1011, %v931
    %v1013 = vmul.f32 %v1001, %v1003
    %v1014 = vmul.f32 %v1013, %v971
    %v1015 = vadd.f32 %v1012, %v1014
    %v1016 = vadd.f32 %v1015, %v733
    %v1017 = vmax.f32 %v1016, 0.0
    %v1018 = vadd.f32 %v1010, %v1017
    %v1019 = vld [vmem:[%s14] sm:$0x1]
    %v1021 = vperm.slane %v1019, 0
    %v1023 = vmul.f32 %v484, %v1021
    %1024 = vadd.xlane.f32.xlu0 %v1023
    %v1025 = vpop.xlane.xlu0 %1024
    %v1026 = vld [vmem:[#allocation2] sm:$0x1]
    %v1028 = vperm.slane %v1026, 0
    %v1030 = vadd.f32 %v1025, %v1028
    %v1031 = vld [vmem:[%s16] sm:$0x1]
    %v1033 = vperm.slane %v1031, 0
    %v1035 = vmul.f32 %v1018, %v1033
    %1036 = vadd.xlane.f32.xlu0 %v1035
    %v1037 = vpop.xlane.xlu0 %1036
    %v1038 = vld [vmem:[#allocation3] sm:$0x1]
    %v1040 = vperm.slane %v1038, 0
    %v1042 = vadd.f32 %v1037, %v1040
    %v1043 = vsub.f32 0.0, %v1030
    %v1044 = vmul.f32 %v1043, 1.442695
    %v1045 = vpow.pop %v1044
    %v1046 = vadd.f32 %v1045, 1.0
    %v1047 = vrcp.pop %v1046
    %v1048 = vsub.f32 0.0, %v1042
    %v1049 = vmul.f32 %v1048, 1.442695
    %v1050 = vpow.pop %v1049
    %v1051 = vadd.f32 %v1050, 1.0
    %v1052 = vrcp.pop %v1051
    %1054 = vrot.lane.b32.xlu0 %v1052, 1
    %v1055 = vpop.permute.xlu0 %1054
    %vm1057 = vcmask 7168
    %v1058 = vsel %vm1057, %v1047, %v1055
    %1059 = vxpose.xlu0.b32.start [1/16] %v1058, 128
    %1060 = vxpose.xlu0.b32.cont [2/16] 0.0, 128
    %1061 = vxpose.xlu0.b32.cont [3/16] 0.0, 128
    %1062 = vxpose.xlu0.b32.cont [4/16] 0.0, 128
    %1063 = vxpose.xlu0.b32.cont [5/16] 0.0, 128
    %1064 = vxpose.xlu0.b32.cont [6/16] 0.0, 128
    %1065 = vxpose.xlu0.b32.cont [7/16] 0.0, 128
    %1066 = vxpose.xlu0.b32.cont [8/16] 0.0, 128
    %1067 = vxpose.xlu0.b32.cont [9/16] 0.0, 128
    %1068 = vxpose.xlu0.b32.cont [10/16] 0.0, 128
    %1069 = vxpose.xlu0.b32.cont [11/16] 0.0, 128
    %1070 = vxpose.xlu0.b32.cont [12/16] 0.0, 128
    %1071 = vxpose.xlu0.b32.cont [13/16] 0.0, 128
    %1072 = vxpose.xlu0.b32.cont [14/16] 0.0, 128
    %1073 = vxpose.xlu0.b32.cont [15/16] 0.0, 128
    %1074 = vxpose.xlu0.b32.end [16/16] 0.0, 128
    %v1075 = vpop.trf.xlu0
    %v1076 = vpop.trf.xlu0
    %v1077 = vpop.trf.xlu0
    %v1078 = vpop.trf.xlu0
    %v1079 = vpop.trf.xlu0
    %v1080 = vpop.trf.xlu0
    %v1081 = vpop.trf.xlu0
    %v1082 = vpop.trf.xlu0
    %v1083 = vpop.trf.xlu0
    %v1084 = vpop.trf.xlu0
    %v1085 = vpop.trf.xlu0
    %v1086 = vpop.trf.xlu0
    %v1087 = vpop.trf.xlu0
    %v1088 = vpop.trf.xlu0
    %v1089 = vpop.trf.xlu0
    %v1090 = vpop.trf.xlu0
    %vm1091 = vcmask 58368
    %1092 = vst.msk [vmem:[#allocation18] sm:$0x3] %vm1091, %v1075
    // Predicated region
    $region106: #{tpu_custom_call.1} parent=1 // pred_check
      _
    $region107: #{tpu_custom_call.1} parent=1 // pred_check_branch
      %1094 = sbr.rel (0) target = $region109
    $region108: #{tpu_custom_call.1} parent=1 // pred_region
      %1096 = vsyncadd [#allocation6], 0
      %s1098 = sshll.u32 [#allocation18], 4
      %s1099 = int_to_ptr.vmem [resolvable:$true] %s1098
      %s1100 = sshll.u32 %s18, 4
      %s1101 = int_to_ptr.hbm [resolvable:$true] %s1100
      %1103 = dma.vmem_to_hbm [thread:$0]  %s1099, 32, %s1101, [#allocation6]
    $region109: #{tpu_custom_call.1} parent=1 // pred_fallthru
      _
    // Predicated region
    $region110: #{tpu_custom_call.1} parent=1 // pred_check
      _
    $region111: #{tpu_custom_call.1} parent=1 // pred_check_branch
      %1105 = sbr.rel (0) target = $region113
    $region112: #{tpu_custom_call.1} parent=1 // pred_region
      %1107 = dma.done [#allocation6], 32
    $region113: #{tpu_custom_call.1} parent=1 // pred_fallthru
      _
    %1108 = vsyncpa [#allocation5], 1
    %1109 = vsyncpa [#allocation8], 1
    %1110 = vsyncpa [#allocation11], 1
    %1111 = vsyncpa [#allocation14], 1
    %1112 = vsyncpa [#allocation17], 1
    %1113 = vsyncpa [#allocation6], 1

</llo_original>
